<compile_context>
chip_gen: v7x
topology: tpu7x:2x2x1
jax: 0.10.0
libtpu: 0.0.40
codegen_flags: <defaults>
</compile_context>

<pallas_src>
import numpy as np
import jax
import jax.numpy as jnp
from jax import lax
from jax.experimental import pallas as pl
from jax.experimental.pallas import tpu as pltpu


# ---------------------------------------------------------------------------
# Fused kernel: im2col-conv + folded BN + ReLU + bilinear x2 + spatial/channel attn
# ---------------------------------------------------------------------------
def decoderv2_fused_kernel(patches_ref, w_ref, scale_ref, shift_ref,
                           u_ref, p_ref, wsq_ref, w1_ref, b1_ref,
                           w2_ref, b2_ref, o_ref):
    # patches_ref : (N*HW, Kp)        im2col patches, K = 9*Cin zero-padded to Kp
    # w_ref       : (Kp, Cp)          conv weights, rows (kh, kw, cin), cols padded
    # scale/shift : (1, Cp)           folded eval-mode BatchNorm affine
    # u_ref       : (N*H2W2, N*HW)    block-diag kron(I_N, kron(A_h, A_w))
    # p_ref       : (N, N*HW)         block-diag row-mean of U (global avg pool)
    # wsq_ref     : (1, Cp)           SpatialAttention2d squeeze weight (row)
    # w1/b1       : (Cp, Cr), (1, Cr) GAB conv1 (1x1)
    # w2/b2       : (Cr, Cp), (1, Cp) GAB conv2 (1x1)
    # o_ref       : (N*H2W2, Cp)      lane-dense output
    Cp = o_ref.shape[1]
    Nb = p_ref.shape[0]
    H2W2 = u_ref.shape[0] // Nb

    # ---- conv3x3: single im2col MXU matmul (full contraction depth, 1 drain) ----
    acc = jnp.dot(patches_ref[...], w_ref[...],
                  preferred_element_type=jnp.float32)            # (N*HW, Cp)

    # ---- folded eval-mode BatchNorm + ReLU (f32 VPU, lane-dense) ----
    y = jnp.maximum(acc * scale_ref[...] + shift_ref[...], 0.0)  # (N*HW, Cp)

    # ---- bilinear x2 upsample: batch folded into one block-diagonal matmul ----
    u = u_ref[...]
    up = jnp.dot(u, y, preferred_element_type=jnp.float32)       # (N*H2W2, Cp)

    # ---- SpatialAttention2d: score is linear in the upsample, so compute it
    #      pre-upsample (4x fewer lane-reduce rows), then upsample the score ----
    s_pre = jnp.sum(y * wsq_ref[...], axis=-1, keepdims=True)    # (N*HW, 1)
    z = jax.nn.sigmoid(jnp.dot(u, s_pre,
                               preferred_element_type=jnp.float32))  # (N*H2W2, 1)

    # ---- GAB channel attention: pooled via row-mean-of-U (pre-upsample,
    #      mathematically == mean over the upsampled map), batched over N ----
    pooled = jnp.dot(p_ref[...], y, preferred_element_type=jnp.float32)  # (N, Cp)
    h = jnp.maximum(jnp.dot(pooled, w1_ref[...],
                            preferred_element_type=jnp.float32) + b1_ref[...],
                    0.0)                                          # (N, Cr)
    g = jax.nn.sigmoid(jnp.dot(h, w2_ref[...],
                               preferred_element_type=jnp.float32)
                       + b2_ref[...])                             # (N, Cp)

    # ---- out = up*z + up*g = up * (z + g) ----
    # Leading-dim reshapes split/merge at multiples of 8 sublanes -> no relayout.
    up3 = up.reshape(Nb, H2W2, Cp)
    z3 = z.reshape(Nb, H2W2, 1)
    out3 = up3 * (z3 + g[:, None, :])
    o_ref[...] = out3.reshape(Nb * H2W2, Cp)


# ---------------------------------------------------------------------------
# Wrapper (glue: layout conversion, BN folding, im2col, lane/K padding)
# ---------------------------------------------------------------------------
def decoderv2_forward(x_nhwc, params):
    N, H, W, Cin = x_nhwc.shape
    Cout = params['conv_w'].shape[-1]
    Cr = params['gab_w1'].shape[1]
    H2, W2 = 2 * H, 2 * W
    HW, H2W2 = H * W, H2 * W2

    LANE = 128
    Cp = ((Cout + LANE - 1) // LANE) * LANE       # pad channels to lane width
    pad_c = Cp - Cout
    K = 9 * Cin
    Kp = ((K + LANE - 1) // LANE) * LANE          # pad contraction to lane width
    pad_k = Kp - K

    # fold BatchNorm (eval mode) into scale/shift
    eps = 1e-5
    scale = params['bn_gamma'] / jnp.sqrt(params['bn_var'] + eps)
    shift = params['bn_beta'] - params['bn_mean'] * scale

    # zero-pad all channel-indexed weights so padded channels stay exactly 0
    w2d = jnp.pad(params['conv_w'].reshape(K, Cout), ((0, pad_k), (0, pad_c)))
    scale_p = jnp.pad(scale, (0, pad_c), constant_values=1.0).reshape(1, Cp)
    shift_p = jnp.pad(shift, (0, pad_c)).reshape(1, Cp)
    wsq_p = jnp.pad(params['sq_w'].reshape(1, Cout), ((0, 0), (0, pad_c)))
    w1_p = jnp.pad(params['gab_w1'], ((0, pad_c), (0, 0)))        # (Cp, Cr)
    b1 = params['gab_b1'].reshape(1, Cr)
    w2_p = jnp.pad(params['gab_w2'], ((0, 0), (0, pad_c)))        # (Cr, Cp)
    b2_p = jnp.pad(params['gab_b2'].reshape(1, Cout), ((0, 0), (0, pad_c)))

    # im2col patch matrix (glue): rows (n, h, w), cols (kh, kw, cin), K padded
    xp = jnp.pad(x_nhwc, ((0, 0), (1, 1), (1, 1), (0, 0)))
    taps = [xp[:, kh:kh + H, kw:kw + W, :].reshape(N * HW, Cin)
            for kh in range(3) for kw in range(3)]
    patches = jnp.pad(jnp.concatenate(taps, axis=-1), ((0, 0), (0, pad_k)))

    # block-diagonal bilinear matrix: folds the batch into one big matmul
    U = params['upsample_mat']                                    # (H2W2, HW)
    eye_n = jnp.eye(N, dtype=U.dtype)
    U_bd = jnp.kron(eye_n, U)                                     # (N*H2W2, N*HW)
    # row-mean of U == global avg pool over the upsampled map, pre-upsample
    P_bd = jnp.kron(eye_n, jnp.mean(U, axis=0, keepdims=True))    # (N, N*HW)

    operands = (patches, w2d, scale_p, shift_p, U_bd, P_bd, wsq_p,
                w1_p, b1, w2_p, b2_p)

    flops = (2 * (N * HW) * Kp * Cp                 # conv im2col matmul
             + 2 * (N * H2W2) * (N * HW) * Cp       # upsample matmul
             + 2 * (N * H2W2) * (N * HW)            # spatial-score upsample
             + 2 * N * (N * HW) * Cp                # global avg pool
             + 4 * N * Cp * Cr                      # GAB 1x1s
             + 6 * (N * H2W2) * Cp)                 # BN/ReLU/gate elementwise
    bytes_accessed = 4 * (sum(int(o.size) for o in operands) + N * H2W2 * Cp)
    cost = pl.CostEstimate(flops=int(flops),
                           transcendentals=int(N * H2W2 + N * Cp),
                           bytes_accessed=int(bytes_accessed))

    vmem = lambda: pl.BlockSpec(memory_space=pltpu.MemorySpace.VMEM)
    out2d = pl.pallas_call(
        decoderv2_fused_kernel,
        out_shape=jax.ShapeDtypeStruct((N * H2W2, Cp), jnp.float32),
        in_specs=[vmem() for _ in range(len(operands))],
        out_specs=vmem(),
        compiler_params=pltpu.CompilerParams(vmem_limit_bytes=32 * 1024 * 1024),
        cost_estimate=cost,
    )(*operands)

    # contiguous reshape (free) + drop the zero pad channels
    return out2d.reshape(N, H2, W2, Cp)[..., :Cout]


decoderv2_forward = jax.jit(decoderv2_forward)


# ---------------------------------------------------------------------------
# Bilinear (align_corners=True) interpolation matrices, same semantics as
# PyTorch nn.Upsample(scale_factor=2, mode='bilinear', align_corners=True)
# ---------------------------------------------------------------------------
def bilinear_matrix(n_in, n_out):
    A = np.zeros((n_out, n_in), dtype=np.float32)
    if n_in == 1:
        A[:, 0] = 1.0
        return A
    for i in range(n_out):
        src = i * (n_in - 1) / (n_out - 1)
        i0 = int(np.floor(src))
        i1 = min(i0 + 1, n_in - 1)
        f = src - i0
        A[i, i0] += 1.0 - f
        A[i, i1] += f
    return A


# ---------------------------------------------------------------------------
# Pure-JAX reference (same NHWC semantics) for a sanity check
# ---------------------------------------------------------------------------
def reference(x_nhwc, params, A_h, A_w):
    eps = 1e-5
    y = lax.conv_general_dilated(
        x_nhwc, params['conv_w'], (1, 1), 'SAME',
        dimension_numbers=('NHWC', 'HWIO', 'NHWC'))
    scale = params['bn_gamma'] / jnp.sqrt(params['bn_var'] + eps)
    y = (y - params['bn_mean']) * scale + params['bn_beta']
    y = jnp.maximum(y, 0.0)
    t = jnp.einsum('oh,nhwc->nowc', A_h, y)
    u = jnp.einsum('pw,nhwc->nhpc', A_w, t)
    z = jax.nn.sigmoid(jnp.einsum('nhwc,cd->nhwd', u, params['sq_w']))
    pooled = u.mean(axis=(1, 2))
    hh = jnp.maximum(pooled @ params['gab_w1'] + params['gab_b1'], 0.0)
    g = jax.nn.sigmoid(hh @ params['gab_w2'] + params['gab_b2'])
    return u * z + u * g[:, None, None, :]


if __name__ == "__main__":
    # small shapes consistent with the module: GAB reduction=16 needs Cf >= 16
    N, Cin, H, W = 2, 16, 8, 8
    Cf = 32                      # n_filters
    Cr = Cf // 16                # GAB hidden = 2

    key = jax.random.PRNGKey(0)
    ks = jax.random.split(key, 10)

    x_nchw = jax.random.normal(ks[0], (N, Cin, H, W), jnp.float32)
    x_nhwc = jnp.transpose(x_nchw, (0, 2, 3, 1))   # layout conversion (glue)

    A_h = bilinear_matrix(H, 2 * H)
    A_w = bilinear_matrix(W, 2 * W)
    U = np.kron(A_h, A_w)        # (4*H*W, H*W) bilinear align_corners matrix

    params = {
        'conv_w':   0.1 * jax.random.normal(ks[1], (3, 3, Cin, Cf), jnp.float32),  # HWIO
        'bn_gamma': 1.0 + 0.1 * jax.random.normal(ks[2], (Cf,), jnp.float32),
        'bn_beta':  0.1 * jax.random.normal(ks[3], (Cf,), jnp.float32),
        'bn_mean':  0.1 * jax.random.normal(ks[4], (Cf,), jnp.float32),
        'bn_var':   jax.random.uniform(ks[5], (Cf,), jnp.float32, 0.5, 1.5),
        'sq_w':     0.1 * jax.random.normal(ks[6], (Cf, 1), jnp.float32),
        'gab_w1':   0.1 * jax.random.normal(ks[7], (Cf, Cr), jnp.float32),
        'gab_b1':   0.1 * jax.random.normal(ks[8], (1, Cr), jnp.float32),
        'gab_w2':   0.1 * jax.random.normal(ks[9], (Cr, Cf), jnp.float32),
        'gab_b2':   jnp.zeros((1, Cf), jnp.float32),
        'upsample_mat': jnp.asarray(U),
    }
    # TODO(synk): BatchNorm2d is implemented in eval mode (running stats folded
    # to scale/shift); training-mode batch statistics are not reproduced.

    out = decoderv2_forward(x_nhwc, params)
    out = jax.block_until_ready(out)

    ref = reference(x_nhwc, params, jnp.asarray(A_h), jnp.asarray(A_w))
    assert out.shape == (N, 2 * H, 2 * W, Cf)
    np.testing.assert_allclose(np.asarray(out), np.asarray(ref),
                               rtol=1e-4, atol=1e-4)
    print("KERNEL_OK")
</pallas_src>

<mosaic_0001>
module attributes {stable_mosaic.version = 11 : i64} {
  func.func @decoderv2_fused_kernel(%arg0: memref<128x256xf32, #tpu.memory_space<vmem>>, %arg1: memref<256x128xf32, #tpu.memory_space<vmem>>, %arg2: memref<1x128xf32, #tpu.memory_space<vmem>>, %arg3: memref<1x128xf32, #tpu.memory_space<vmem>>, %arg4: memref<512x128xf32, #tpu.memory_space<vmem>>, %arg5: memref<2x128xf32, #tpu.memory_space<vmem>>, %arg6: memref<1x128xf32, #tpu.memory_space<vmem>>, %arg7: memref<128x2xf32, #tpu.memory_space<vmem>>, %arg8: memref<1x2xf32, #tpu.memory_space<vmem>>, %arg9: memref<2x128xf32, #tpu.memory_space<vmem>>, %arg10: memref<1x128xf32, #tpu.memory_space<vmem>>, %arg11: memref<512x128xf32, #tpu.memory_space<vmem>>) attributes {dimension_semantics = [], scalar_prefetch = 0 : i64, scratch_operands = 0 : i64, tpu.core_type = #tpu.core_type<tc>} {
    %c0 = arith.constant 0 : index
    %c0_0 = arith.constant 0 : index
    %0 = vector.load %arg0[%c0, %c0_0] : memref<128x256xf32, #tpu.memory_space<vmem>>, vector<128x256xf32>
    %c0_1 = arith.constant 0 : index
    %c0_2 = arith.constant 0 : index
    %1 = vector.load %arg1[%c0_1, %c0_2] : memref<256x128xf32, #tpu.memory_space<vmem>>, vector<256x128xf32>
    %cst = arith.constant dense<0.000000e+00> : vector<128x128xf32>
    %2 = tpu.matmul %0, %1, %cst {dimension_numbers = #tpu.dot_dimension_numbers<[1], [0], [0], [1], [0, 0, 1, 1], [], []>} : vector<128x256xf32>, vector<256x128xf32>, vector<128x128xf32> -> vector<128x128xf32>
    %c0_3 = arith.constant 0 : index
    %c0_4 = arith.constant 0 : index
    %3 = vector.load %arg2[%c0_3, %c0_4] : memref<1x128xf32, #tpu.memory_space<vmem>>, vector<1x128xf32>
    %4 = vector.broadcast %3 : vector<1x128xf32> to vector<128x128xf32>
    %5 = arith.mulf %2, %4 : vector<128x128xf32>
    %c0_5 = arith.constant 0 : index
    %c0_6 = arith.constant 0 : index
    %6 = vector.load %arg3[%c0_5, %c0_6] : memref<1x128xf32, #tpu.memory_space<vmem>>, vector<1x128xf32>
    %7 = vector.broadcast %6 : vector<1x128xf32> to vector<128x128xf32>
    %8 = arith.addf %5, %7 : vector<128x128xf32>
    %cst_7 = arith.constant 0.000000e+00 : f32
    %9 = vector.broadcast %cst_7 : f32 to vector<128x128xf32>
    %10 = arith.maximumf %8, %9 : vector<128x128xf32>
    %c0_8 = arith.constant 0 : index
    %c0_9 = arith.constant 0 : index
    %11 = vector.load %arg4[%c0_8, %c0_9] : memref<512x128xf32, #tpu.memory_space<vmem>>, vector<512x128xf32>
    %cst_10 = arith.constant dense<0.000000e+00> : vector<512x128xf32>
    %12 = tpu.matmul %11, %10, %cst_10 {dimension_numbers = #tpu.dot_dimension_numbers<[1], [0], [0], [1], [0, 0, 1, 1], [], []>} : vector<512x128xf32>, vector<128x128xf32>, vector<512x128xf32> -> vector<512x128xf32>
    %c0_11 = arith.constant 0 : index
    %c0_12 = arith.constant 0 : index
    %13 = vector.load %arg6[%c0_11, %c0_12] : memref<1x128xf32, #tpu.memory_space<vmem>>, vector<1x128xf32>
    %14 = vector.broadcast %13 : vector<1x128xf32> to vector<128x128xf32>
    %15 = arith.mulf %10, %14 : vector<128x128xf32>
    %cst_13 = arith.constant dense<0.000000e+00> : vector<128xf32>
    %16 = vector.multi_reduction <add>, %15, %cst_13 [1] : vector<128x128xf32> to vector<128xf32>
    %17 = vector.shape_cast %16 : vector<128xf32> to vector<128x1xf32>
    %cst_14 = arith.constant dense<0.000000e+00> : vector<512x1xf32>
    %18 = tpu.matmul %11, %17, %cst_14 {dimension_numbers = #tpu.dot_dimension_numbers<[1], [0], [0], [1], [0, 0, 1, 1], [], []>} : vector<512x128xf32>, vector<128x1xf32>, vector<512x1xf32> -> vector<512x1xf32>
    %19 = arith.negf %18 : vector<512x1xf32>
    %20 = math.exp %19 : vector<512x1xf32>
    %cst_15 = arith.constant 1.000000e+00 : f32
    %21 = vector.broadcast %cst_15 : f32 to vector<512x1xf32>
    %22 = arith.addf %21, %20 : vector<512x1xf32>
    %23 = arith.divf %21, %22 : vector<512x1xf32>
    %c0_16 = arith.constant 0 : index
    %c0_17 = arith.constant 0 : index
    %24 = vector.load %arg5[%c0_16, %c0_17] : memref<2x128xf32, #tpu.memory_space<vmem>>, vector<2x128xf32>
    %cst_18 = arith.constant dense<0.000000e+00> : vector<2x128xf32>
    %25 = tpu.matmul %24, %10, %cst_18 {dimension_numbers = #tpu.dot_dimension_numbers<[1], [0], [0], [1], [0, 0, 1, 1], [], []>} : vector<2x128xf32>, vector<128x128xf32>, vector<2x128xf32> -> vector<2x128xf32>
    %c0_19 = arith.constant 0 : index
    %c0_20 = arith.constant 0 : index
    %26 = vector.load %arg7[%c0_19, %c0_20] : memref<128x2xf32, #tpu.memory_space<vmem>>, vector<128x2xf32>
    %cst_21 = arith.constant dense<0.000000e+00> : vector<2x2xf32>
    %27 = tpu.matmul %25, %26, %cst_21 {dimension_numbers = #tpu.dot_dimension_numbers<[1], [0], [0], [1], [0, 0, 1, 1], [], []>} : vector<2x128xf32>, vector<128x2xf32>, vector<2x2xf32> -> vector<2x2xf32>
    %c0_22 = arith.constant 0 : index
    %c0_23 = arith.constant 0 : index
    %28 = vector.load %arg8[%c0_22, %c0_23] : memref<1x2xf32, #tpu.memory_space<vmem>>, vector<1x2xf32>
    %29 = vector.broadcast %28 : vector<1x2xf32> to vector<2x2xf32>
    %30 = arith.addf %27, %29 : vector<2x2xf32>
    %cst_24 = arith.constant 0.000000e+00 : f32
    %31 = vector.broadcast %cst_24 : f32 to vector<2x2xf32>
    %32 = arith.maximumf %30, %31 : vector<2x2xf32>
    %c0_25 = arith.constant 0 : index
    %c0_26 = arith.constant 0 : index
    %33 = vector.load %arg9[%c0_25, %c0_26] : memref<2x128xf32, #tpu.memory_space<vmem>>, vector<2x128xf32>
    %cst_27 = arith.constant dense<0.000000e+00> : vector<2x128xf32>
    %34 = tpu.matmul %32, %33, %cst_27 {dimension_numbers = #tpu.dot_dimension_numbers<[1], [0], [0], [1], [0, 0, 1, 1], [], []>} : vector<2x2xf32>, vector<2x128xf32>, vector<2x128xf32> -> vector<2x128xf32>
    %c0_28 = arith.constant 0 : index
    %c0_29 = arith.constant 0 : index
    %35 = vector.load %arg10[%c0_28, %c0_29] : memref<1x128xf32, #tpu.memory_space<vmem>>, vector<1x128xf32>
    %36 = vector.broadcast %35 : vector<1x128xf32> to vector<2x128xf32>
    %37 = arith.addf %34, %36 : vector<2x128xf32>
    %38 = arith.negf %37 : vector<2x128xf32>
    %39 = math.exp %38 : vector<2x128xf32>
    %cst_30 = arith.constant 1.000000e+00 : f32
    %40 = vector.broadcast %cst_30 : f32 to vector<2x128xf32>
    %41 = arith.addf %40, %39 : vector<2x128xf32>
    %42 = arith.divf %40, %41 : vector<2x128xf32>
    %43 = vector.shape_cast %12 : vector<512x128xf32> to vector<2x256x128xf32>
    %44 = vector.shape_cast %23 : vector<512x1xf32> to vector<2x256x1xf32>
    %45 = vector.shape_cast %42 : vector<2x128xf32> to vector<2x1x128xf32>
    %46 = vector.broadcast %44 : vector<2x256x1xf32> to vector<2x256x128xf32>
    %47 = vector.broadcast %45 : vector<2x1x128xf32> to vector<2x256x128xf32>
    %48 = arith.addf %46, %47 : vector<2x256x128xf32>
    %49 = arith.mulf %43, %48 : vector<2x256x128xf32>
    %50 = vector.shape_cast %49 : vector<2x256x128xf32> to vector<512x128xf32>
    %c0_31 = arith.constant 0 : index
    %c0_32 = arith.constant 0 : index
    %51 = vector.load %arg11[%c0_31, %c0_32] : memref<512x128xf32, #tpu.memory_space<vmem>>, vector<512x128xf32>
    tpu.vector_store %arg11[%c0_31, %c0_32], %50 {strides = array<i32>} : memref<512x128xf32, #tpu.memory_space<vmem>>, vector<512x128xf32>,
    return
  }
}

</mosaic_0001>

<llo_original>
// kernel: decoderv2_forward.1
$region0: #{decoderv2_forward.1}
  #allocation0 [shape = 'u32[]', space=smem, size = 0x4, offset = 0x4, fixed_abs, tag = 'smem constant byte address 0x4 - core index']
  #allocation1 [shape = 'u32[144,128]{1,0:T(1,128)}', space=vmem, size = 0x12000, scoped, tag = 'internal scratch']
  %s0 = inlined_call_operand.vmem [shape: f32[128,256], index: 0, kind: input, shape index: {}]
  %s1 = inlined_call_operand.vmem [shape: f32[256,128], index: 1, kind: input, shape index: {}]
  %s2 = inlined_call_operand.vmem [shape: f32[1,128], index: 2, kind: input, shape index: {}]
  %s3 = inlined_call_operand.vmem [shape: f32[1,128], index: 3, kind: input, shape index: {}]
  %s4 = inlined_call_operand.vmem [shape: f32[512,128], index: 4, kind: input, shape index: {}]
  %s5 = inlined_call_operand.vmem [shape: f32[2,128], index: 5, kind: input, shape index: {}]
  %s6 = inlined_call_operand.vmem [shape: f32[1,128], index: 6, kind: input, shape index: {}]
  %s7 = inlined_call_operand.vmem [shape: f32[128,2], index: 7, kind: input, shape index: {}]
  %s8 = inlined_call_operand.vmem [shape: f32[1,2], index: 8, kind: input, shape index: {}]
  %s9 = inlined_call_operand.vmem [shape: f32[2,128], index: 9, kind: input, shape index: {}]
  %s10 = inlined_call_operand.vmem [shape: f32[1,128], index: 10, kind: input, shape index: {}]
  %s11 = inlined_call_operand.hbm [shape: f32[512,128], index: 11, kind: output, shape index: {}]
  %s12 = sld [smem:[#allocation0]]
  $region54: #{decoderv2_forward.1} parent=0
    _
  %s14 = ssub.s32 1, %s12
  %s15 = scalar_select 0, %s14, %s12
  $region1: #{decoderv2_forward.1} parent=0
    #allocation2 [shape = 'u8[262144]{0}', space=vmem, size = 0x40000, scoped, tag = 'output window, operand 0, single buffered']
    #allocation3 [shape = 's32[1]{0}', space=sflag, size = 0x4, scoped, tag = 'scoped memory for decoderv2_forward.1']
    %16 = vsyncpa [#allocation3], 0
    // Predicated region
    $region2: #{decoderv2_forward.1} parent=1 // pred_check
      _
    $region3: #{decoderv2_forward.1} parent=1 // pred_check_branch
      %18 = sbr.rel (0) target = $region5
    $region4: #{decoderv2_forward.1} parent=1 // pred_region
      _
    $region5: #{decoderv2_forward.1} parent=1 // pred_fallthru
      _
    // Predicated region
    $region6: #{decoderv2_forward.1} parent=1 // pred_check
      _
    $region7: #{decoderv2_forward.1} parent=1 // pred_check_branch
      %20 = sbr.rel (0) target = $region9
    $region8: #{decoderv2_forward.1} parent=1 // pred_region
      _
    $region9: #{decoderv2_forward.1} parent=1 // pred_fallthru
      _
    // Predicated region
    $region10: #{decoderv2_forward.1} parent=1 // pred_check
      _
    $region11: #{decoderv2_forward.1} parent=1 // pred_check_branch
      %22 = sbr.rel (0) target = $region13
    $region12: #{decoderv2_forward.1} parent=1 // pred_region
      _
    $region13: #{decoderv2_forward.1} parent=1 // pred_fallthru
      _
    // Predicated region
    $region14: #{decoderv2_forward.1} parent=1 // pred_check
      _
    $region15: #{decoderv2_forward.1} parent=1 // pred_check_branch
      %24 = sbr.rel (0) target = $region17
    $region16: #{decoderv2_forward.1} parent=1 // pred_region
      _
    $region17: #{decoderv2_forward.1} parent=1 // pred_fallthru
      _
    // Predicated region
    $region18: #{decoderv2_forward.1} parent=1 // pred_check
      _
    $region19: #{decoderv2_forward.1} parent=1 // pred_check_branch
      %26 = sbr.rel (0) target = $region21
    $region20: #{decoderv2_forward.1} parent=1 // pred_region
      _
    $region21: #{decoderv2_forward.1} parent=1 // pred_fallthru
      _
    // Predicated region
    $region22: #{decoderv2_forward.1} parent=1 // pred_check
      _
    $region23: #{decoderv2_forward.1} parent=1 // pred_check_branch
      %28 = sbr.rel (0) target = $region25
    $region24: #{decoderv2_forward.1} parent=1 // pred_region
      _
    $region25: #{decoderv2_forward.1} parent=1 // pred_fallthru
      _
    // Predicated region
    $region26: #{decoderv2_forward.1} parent=1 // pred_check
      _
    $region27: #{decoderv2_forward.1} parent=1 // pred_check_branch
      %30 = sbr.rel (0) target = $region29
    $region28: #{decoderv2_forward.1} parent=1 // pred_region
      _
    $region29: #{decoderv2_forward.1} parent=1 // pred_fallthru
      _
    // Predicated region
    $region30: #{decoderv2_forward.1} parent=1 // pred_check
      _
    $region31: #{decoderv2_forward.1} parent=1 // pred_check_branch
      %32 = sbr.rel (0) target = $region33
    $region32: #{decoderv2_forward.1} parent=1 // pred_region
      _
    $region33: #{decoderv2_forward.1} parent=1 // pred_fallthru
      _
    // Predicated region
    $region34: #{decoderv2_forward.1} parent=1 // pred_check
      _
    $region35: #{decoderv2_forward.1} parent=1 // pred_check_branch
      %34 = sbr.rel (0) target = $region37
    $region36: #{decoderv2_forward.1} parent=1 // pred_region
      _
    $region37: #{decoderv2_forward.1} parent=1 // pred_fallthru
      _
    // Predicated region
    $region38: #{decoderv2_forward.1} parent=1 // pred_check
      _
    $region39: #{decoderv2_forward.1} parent=1 // pred_check_branch
      %36 = sbr.rel (0) target = $region41
    $region40: #{decoderv2_forward.1} parent=1 // pred_region
      _
    $region41: #{decoderv2_forward.1} parent=1 // pred_fallthru
      _
    // Predicated region
    $region42: #{decoderv2_forward.1} parent=1 // pred_check
      _
    $region43: #{decoderv2_forward.1} parent=1 // pred_check_branch
      %38 = sbr.rel (0) target = $region45
    $region44: #{decoderv2_forward.1} parent=1 // pred_region
      _
    $region45: #{decoderv2_forward.1} parent=1 // pred_fallthru
      _
    %v39 = vld [vmem:[%s0] sm:$0xff]
    %v40 = vld [vmem:[%s0 + $0x8] sm:$0xff]
    %v41 = vld [vmem:[%s0 + $0x10] sm:$0xff]
    %v42 = vld [vmem:[%s0 + $0x18] sm:$0xff]
    %v43 = vld [vmem:[%s0 + $0x20] sm:$0xff]
    %v44 = vld [vmem:[%s0 + $0x28] sm:$0xff]
    %v45 = vld [vmem:[%s0 + $0x30] sm:$0xff]
    %v46 = vld [vmem:[%s0 + $0x38] sm:$0xff]
    %v47 = vld [vmem:[%s0 + $0x40] sm:$0xff]
    %v48 = vld [vmem:[%s0 + $0x48] sm:$0xff]
    %v49 = vld [vmem:[%s0 + $0x50] sm:$0xff]
    %v50 = vld [vmem:[%s0 + $0x58] sm:$0xff]
    %v51 = vld [vmem:[%s0 + $0x60] sm:$0xff]
    %v52 = vld [vmem:[%s0 + $0x68] sm:$0xff]
    %v53 = vld [vmem:[%s0 + $0x70] sm:$0xff]
    %v54 = vld [vmem:[%s0 + $0x78] sm:$0xff]
    %v55 = vld [vmem:[%s0 + $0x80] sm:$0xff]
    %v56 = vld [vmem:[%s0 + $0x88] sm:$0xff]
    %v57 = vld [vmem:[%s0 + $0x90] sm:$0xff]
    %v58 = vld [vmem:[%s0 + $0x98] sm:$0xff]
    %v59 = vld [vmem:[%s0 + $0xa0] sm:$0xff]
    %v60 = vld [vmem:[%s0 + $0xa8] sm:$0xff]
    %v61 = vld [vmem:[%s0 + $0xb0] sm:$0xff]
    %v62 = vld [vmem:[%s0 + $0xb8] sm:$0xff]
    %v63 = vld [vmem:[%s0 + $0xc0] sm:$0xff]
    %v64 = vld [vmem:[%s0 + $0xc8] sm:$0xff]
    %v65 = vld [vmem:[%s0 + $0xd0] sm:$0xff]
    %v66 = vld [vmem:[%s0 + $0xd8] sm:$0xff]
    %v67 = vld [vmem:[%s0 + $0xe0] sm:$0xff]
    %v68 = vld [vmem:[%s0 + $0xe8] sm:$0xff]
    %v69 = vld [vmem:[%s0 + $0xf0] sm:$0xff]
    %v70 = vld [vmem:[%s0 + $0xf8] sm:$0xff]
    %v71 = vld [vmem:[%s1] sm:$0xff]
    %v72 = vld [vmem:[%s1 + $0x8] sm:$0xff]
    %v73 = vld [vmem:[%s1 + $0x10] sm:$0xff]
    %v74 = vld [vmem:[%s1 + $0x18] sm:$0xff]
    %v75 = vld [vmem:[%s1 + $0x20] sm:$0xff]
    %v76 = vld [vmem:[%s1 + $0x28] sm:$0xff]
    %v77 = vld [vmem:[%s1 + $0x30] sm:$0xff]
    %v78 = vld [vmem:[%s1 + $0x38] sm:$0xff]
    %v79 = vld [vmem:[%s1 + $0x40] sm:$0xff]
    %v80 = vld [vmem:[%s1 + $0x48] sm:$0xff]
    %v81 = vld [vmem:[%s1 + $0x50] sm:$0xff]
    %v82 = vld [vmem:[%s1 + $0x58] sm:$0xff]
    %v83 = vld [vmem:[%s1 + $0x60] sm:$0xff]
    %v84 = vld [vmem:[%s1 + $0x68] sm:$0xff]
    %v85 = vld [vmem:[%s1 + $0x70] sm:$0xff]
    %v86 = vld [vmem:[%s1 + $0x78] sm:$0xff]
    %v87 = vld [vmem:[%s1 + $0x80] sm:$0xff]
    %v88 = vld [vmem:[%s1 + $0x88] sm:$0xff]
    %v89 = vld [vmem:[%s1 + $0x90] sm:$0xff]
    %v90 = vld [vmem:[%s1 + $0x98] sm:$0xff]
    %v91 = vld [vmem:[%s1 + $0xa0] sm:$0xff]
    %v92 = vld [vmem:[%s1 + $0xa8] sm:$0xff]
    %v93 = vld [vmem:[%s1 + $0xb0] sm:$0xff]
    %v94 = vld [vmem:[%s1 + $0xb8] sm:$0xff]
    %v95 = vld [vmem:[%s1 + $0xc0] sm:$0xff]
    %v96 = vld [vmem:[%s1 + $0xc8] sm:$0xff]
    %v97 = vld [vmem:[%s1 + $0xd0] sm:$0xff]
    %v98 = vld [vmem:[%s1 + $0xd8] sm:$0xff]
    %v99 = vld [vmem:[%s1 + $0xe0] sm:$0xff]
    %v100 = vld [vmem:[%s1 + $0xe8] sm:$0xff]
    %v101 = vld [vmem:[%s1 + $0xf0] sm:$0xff]
    %v102 = vld [vmem:[%s1 + $0xf8] sm:$0xff]
    %103 = vmatprep.subr.mxu0 0.0
    %104 = vmatpush1.msra.mxu0 %v71
    %105 = vmatprep.subr.mxu0 0.0
    %106 = vmatpush1.msra.mxu0 %v72
    %107 = vmatprep.subr.mxu0 0.0
    %108 = vmatpush1.msra.mxu0 %v73
    %109 = vmatprep.subr.mxu0 0.0
    %110 = vmatpush1.msra.mxu0 %v74
    %111 = vmatprep.subr.mxu0 0.0
    %112 = vmatpush1.msra.mxu0 %v75
    %113 = vmatprep.subr.mxu0 0.0
    %114 = vmatpush1.msra.mxu0 %v76
    %115 = vmatprep.subr.mxu0 0.0
    %116 = vmatpush1.msra.mxu0 %v77
    %117 = vmatprep.subr.mxu0 0.0
    %118 = vmatpush1.msra.mxu0 %v78
    %119 = vmatprep.subr.mxu0 0.0
    %120 = vmatpush1.msra.mxu0 %v79
    %121 = vmatprep.subr.mxu0 0.0
    %122 = vmatpush1.msra.mxu0 %v80
    %123 = vmatprep.subr.mxu0 0.0
    %124 = vmatpush1.msra.mxu0 %v81
    %125 = vmatprep.subr.mxu0 0.0
    %126 = vmatpush1.msra.mxu0 %v82
    %127 = vmatprep.subr.mxu0 0.0
    %128 = vmatpush1.msra.mxu0 %v83
    %129 = vmatprep.subr.mxu0 0.0
    %130 = vmatpush1.msra.mxu0 %v84
    %131 = vmatprep.subr.mxu0 0.0
    %132 = vmatpush1.msra.mxu0 %v85
    %133 = vmatprep.subr.mxu0 0.0
    %134 = vmatpush1.msra.mxu0 %v86
    %135 = vmatprep.subr.mxu0 0.0
    %136 = vmatpush1.msra.mxu0 %v87
    %137 = vmatprep.subr.mxu0 0.0
    %138 = vmatpush1.msra.mxu0 %v88
    %139 = vmatprep.subr.mxu0 0.0
    %140 = vmatpush1.msra.mxu0 %v89
    %141 = vmatprep.subr.mxu0 0.0
    %142 = vmatpush1.msra.mxu0 %v90
    %143 = vmatprep.subr.mxu0 0.0
    %144 = vmatpush1.msra.mxu0 %v91
    %145 = vmatprep.subr.mxu0 0.0
    %146 = vmatpush1.msra.mxu0 %v92
    %147 = vmatprep.subr.mxu0 0.0
    %148 = vmatpush1.msra.mxu0 %v93
    %149 = vmatprep.subr.mxu0 0.0
    %150 = vmatpush1.msra.mxu0 %v94
    %151 = vmatprep.subr.mxu0 0.0
    %152 = vmatpush1.msra.mxu0 %v95
    %153 = vmatprep.subr.mxu0 0.0
    %154 = vmatpush1.msra.mxu0 %v96
    %155 = vmatprep.subr.mxu0 0.0
    %156 = vmatpush1.msra.mxu0 %v97
    %157 = vmatprep.subr.mxu0 0.0
    %158 = vmatpush1.msra.mxu0 %v98
    %159 = vmatprep.subr.mxu0 0.0
    %160 = vmatpush1.msra.mxu0 %v99
    %161 = vmatprep.subr.mxu0 0.0
    %162 = vmatpush1.msra.mxu0 %v100
    %163 = vmatprep.subr.mxu0 0.0
    %164 = vmatpush1.msra.mxu0 %v101
    %165 = vmatprep.subr.mxu0 0.0
    %166 = vmatpush1.msra.mxu0 %v102
    %167 = vmatprep.mubr.f32.mxu0 %v40
    %168 = vmatmul.mubr.f32.gmra.mrb[0].mxu0 %v39
    %v169 = vpop.f32.mrb[0].mxu0
    %v170 = vadd.f32 0.0, %v169
    %v171 = vpop.f32.mrb[0].mxu0
    %172 = vmatprep.mubr.f32.mxu0 %v42
    %173 = vmatmul.mubr.f32.gmra.mrb[0].mxu0 %v41
    %v174 = vpop.f32.mrb[0].mxu0
    %v175 = vadd.f32 0.0, %v174
    %v176 = vpop.f32.mrb[0].mxu0
    %177 = vmatprep.mubr.f32.mxu0 %v44
    %178 = vmatmul.mubr.f32.gmra.mrb[0].mxu0 %v43
    %v179 = vpop.f32.mrb[0].mxu0
    %v180 = vadd.f32 0.0, %v179
    %v181 = vpop.f32.mrb[0].mxu0
    %182 = vmatprep.mubr.f32.mxu0 %v46
    %183 = vmatmul.mubr.f32.gmra.mrb[0].mxu0 %v45
    %v184 = vpop.f32.mrb[0].mxu0
    %v185 = vadd.f32 0.0, %v184
    %v186 = vpop.f32.mrb[0].mxu0
    %187 = vmatprep.mubr.f32.mxu0 %v48
    %188 = vmatmul.mubr.f32.gmra.mrb[0].mxu0 %v47
    %v189 = vpop.f32.mrb[0].mxu0
    %v190 = vadd.f32 0.0, %v189
    %v191 = vpop.f32.mrb[0].mxu0
    %192 = vmatprep.mubr.f32.mxu0 %v50
    %193 = vmatmul.mubr.f32.gmra.mrb[0].mxu0 %v49
    %v194 = vpop.f32.mrb[0].mxu0
    %v195 = vadd.f32 0.0, %v194
    %v196 = vpop.f32.mrb[0].mxu0
    %197 = vmatprep.mubr.f32.mxu0 %v52
    %198 = vmatmul.mubr.f32.gmra.mrb[0].mxu0 %v51
    %v199 = vpop.f32.mrb[0].mxu0
    %v200 = vadd.f32 0.0, %v199
    %v201 = vpop.f32.mrb[0].mxu0
    %202 = vmatprep.mubr.f32.mxu0 %v54
    %203 = vmatmul.mubr.f32.gmra.mrb[0].mxu0 %v53
    %v204 = vpop.f32.mrb[0].mxu0
    %v205 = vadd.f32 0.0, %v204
    %v206 = vpop.f32.mrb[0].mxu0
    %207 = vmatprep.mubr.f32.mxu0 %v56
    %208 = vmatmul.mubr.f32.gmra.mrb[0].mxu0 %v55
    %v209 = vpop.f32.mrb[0].mxu0
    %v210 = vadd.f32 0.0, %v209
    %v211 = vpop.f32.mrb[0].mxu0
    %212 = vmatprep.mubr.f32.mxu0 %v58
    %213 = vmatmul.mubr.f32.gmra.mrb[0].mxu0 %v57
    %v214 = vpop.f32.mrb[0].mxu0
    %v215 = vadd.f32 0.0, %v214
    %v216 = vpop.f32.mrb[0].mxu0
    %217 = vmatprep.mubr.f32.mxu0 %v60
    %218 = vmatmul.mubr.f32.gmra.mrb[0].mxu0 %v59
    %v219 = vpop.f32.mrb[0].mxu0
    %v220 = vadd.f32 0.0, %v219
    %v221 = vpop.f32.mrb[0].mxu0
    %222 = vmatprep.mubr.f32.mxu0 %v62
    %223 = vmatmul.mubr.f32.gmra.mrb[0].mxu0 %v61
    %v224 = vpop.f32.mrb[0].mxu0
    %v225 = vadd.f32 0.0, %v224
    %v226 = vpop.f32.mrb[0].mxu0
    %227 = vmatprep.mubr.f32.mxu0 %v64
    %228 = vmatmul.mubr.f32.gmra.mrb[0].mxu0 %v63
    %v229 = vpop.f32.mrb[0].mxu0
    %v230 = vadd.f32 0.0, %v229
    %v231 = vpop.f32.mrb[0].mxu0
    %232 = vmatprep.mubr.f32.mxu0 %v66
    %233 = vmatmul.mubr.f32.gmra.mrb[0].mxu0 %v65
    %v234 = vpop.f32.mrb[0].mxu0
    %v235 = vadd.f32 0.0, %v234
    %v236 = vpop.f32.mrb[0].mxu0
    %237 = vmatprep.mubr.f32.mxu0 %v68
    %238 = vmatmul.mubr.f32.gmra.mrb[0].mxu0 %v67
    %v239 = vpop.f32.mrb[0].mxu0
    %v240 = vadd.f32 0.0, %v239
    %v241 = vpop.f32.mrb[0].mxu0
    %242 = vmatprep.mubr.f32.mxu0 %v70
    %243 = vmatmul.mubr.f32.gmra.mrb[0].mxu0 %v69
    %v244 = vpop.f32.mrb[0].mxu0
    %v245 = vadd.f32 0.0, %v244
    %v246 = vpop.f32.mrb[0].mxu0
    %247 = vdwg.mxu0
    %v248 = vld [vmem:[%s2] sm:$0x1]
    %v250 = vlaneseq
    %v251 = vshrl.u32 %v250, 7
    %v252 = vsub.s32 0, %v251
    %v253 = vrot.slane %v248, %v252
    %v255 = vmul.f32 %v170, %v253
    %v256 = vmul.f32 %v175, %v253
    %v257 = vmul.f32 %v180, %v253
    %v258 = vmul.f32 %v185, %v253
    %v259 = vmul.f32 %v190, %v253
    %v260 = vmul.f32 %v195, %v253
    %v261 = vmul.f32 %v200, %v253
    %v262 = vmul.f32 %v205, %v253
    %v263 = vmul.f32 %v210, %v253
    %v264 = vmul.f32 %v215, %v253
    %v265 = vmul.f32 %v220, %v253
    %v266 = vmul.f32 %v225, %v253
    %v267 = vmul.f32 %v230, %v253
    %v268 = vmul.f32 %v235, %v253
    %v269 = vmul.f32 %v240, %v253
    %v270 = vmul.f32 %v245, %v253
    %v271 = vld [vmem:[%s3] sm:$0x1]
    %v273 = vlaneseq
    %v274 = vshrl.u32 %v273, 7
    %v275 = vsub.s32 0, %v274
    %v276 = vrot.slane %v271, %v275
    %v278 = vadd.f32 %v255, %v276
    %v279 = vadd.f32 %v256, %v276
    %v280 = vadd.f32 %v257, %v276
    %v281 = vadd.f32 %v258, %v276
    %v282 = vadd.f32 %v259, %v276
    %v283 = vadd.f32 %v260, %v276
    %v284 = vadd.f32 %v261, %v276
    %v285 = vadd.f32 %v262, %v276
    %v286 = vadd.f32 %v263, %v276
    %v287 = vadd.f32 %v264, %v276
    %v288 = vadd.f32 %v265, %v276
    %v289 = vadd.f32 %v266, %v276
    %v290 = vadd.f32 %v267, %v276
    %v291 = vadd.f32 %v268, %v276
    %v292 = vadd.f32 %v269, %v276
    %v293 = vadd.f32 %v270, %v276
    %v294 = vmax.f32 %v278, 0.0
    %v295 = vmax.f32 %v279, 0.0
    %v296 = vmax.f32 %v280, 0.0
    %v297 = vmax.f32 %v281, 0.0
    %v298 = vmax.f32 %v282, 0.0
    %v299 = vmax.f32 %v283, 0.0
    %v300 = vmax.f32 %v284, 0.0
    %v301 = vmax.f32 %v285, 0.0
    %v302 = vmax.f32 %v286, 0.0
    %v303 = vmax.f32 %v287, 0.0
    %v304 = vmax.f32 %v288, 0.0
    %v305 = vmax.f32 %v289, 0.0
    %v306 = vmax.f32 %v290, 0.0
    %v307 = vmax.f32 %v291, 0.0
    %v308 = vmax.f32 %v292, 0.0
    %v309 = vmax.f32 %v293, 0.0
    %v310 = vld [vmem:[%s4] sm:$0xff]
    %v311 = vld [vmem:[%s4 + $0x8] sm:$0xff]
    %v312 = vld [vmem:[%s4 + $0x10] sm:$0xff]
    %v313 = vld [vmem:[%s4 + $0x18] sm:$0xff]
    %v314 = vld [vmem:[%s4 + $0x20] sm:$0xff]
    %v315 = vld [vmem:[%s4 + $0x28] sm:$0xff]
    %v316 = vld [vmem:[%s4 + $0x30] sm:$0xff]
    %v317 = vld [vmem:[%s4 + $0x38] sm:$0xff]
    %v318 = vld [vmem:[%s4 + $0x40] sm:$0xff]
    %v319 = vld [vmem:[%s4 + $0x48] sm:$0xff]
    %v320 = vld [vmem:[%s4 + $0x50] sm:$0xff]
    %v321 = vld [vmem:[%s4 + $0x58] sm:$0xff]
    %v322 = vld [vmem:[%s4 + $0x60] sm:$0xff]
    %v323 = vld [vmem:[%s4 + $0x68] sm:$0xff]
    %v324 = vld [vmem:[%s4 + $0x70] sm:$0xff]
    %v325 = vld [vmem:[%s4 + $0x78] sm:$0xff]
    %v326 = vld [vmem:[%s4 + $0x80] sm:$0xff]
    %v327 = vld [vmem:[%s4 + $0x88] sm:$0xff]
    %v328 = vld [vmem:[%s4 + $0x90] sm:$0xff]
    %v329 = vld [vmem:[%s4 + $0x98] sm:$0xff]
    %v330 = vld [vmem:[%s4 + $0xa0] sm:$0xff]
    %v331 = vld [vmem:[%s4 + $0xa8] sm:$0xff]
    %v332 = vld [vmem:[%s4 + $0xb0] sm:$0xff]
    %v333 = vld [vmem:[%s4 + $0xb8] sm:$0xff]
    %v334 = vld [vmem:[%s4 + $0xc0] sm:$0xff]
    %v335 = vld [vmem:[%s4 + $0xc8] sm:$0xff]
    %v336 = vld [vmem:[%s4 + $0xd0] sm:$0xff]
    %v337 = vld [vmem:[%s4 + $0xd8] sm:$0xff]
    %v338 = vld [vmem:[%s4 + $0xe0] sm:$0xff]
    %v339 = vld [vmem:[%s4 + $0xe8] sm:$0xff]
    %v340 = vld [vmem:[%s4 + $0xf0] sm:$0xff]
    %v341 = vld [vmem:[%s4 + $0xf8] sm:$0xff]
    %v342 = vld [vmem:[%s4 + $0x100] sm:$0xff]
    %v343 = vld [vmem:[%s4 + $0x108] sm:$0xff]
    %v344 = vld [vmem:[%s4 + $0x110] sm:$0xff]
    %v345 = vld [vmem:[%s4 + $0x118] sm:$0xff]
    %v346 = vld [vmem:[%s4 + $0x120] sm:$0xff]
    %v347 = vld [vmem:[%s4 + $0x128] sm:$0xff]
    %v348 = vld [vmem:[%s4 + $0x130] sm:$0xff]
    %v349 = vld [vmem:[%s4 + $0x138] sm:$0xff]
    %v350 = vld [vmem:[%s4 + $0x140] sm:$0xff]
    %v351 = vld [vmem:[%s4 + $0x148] sm:$0xff]
    %v352 = vld [vmem:[%s4 + $0x150] sm:$0xff]
    %v353 = vld [vmem:[%s4 + $0x158] sm:$0xff]
    %v354 = vld [vmem:[%s4 + $0x160] sm:$0xff]
    %v355 = vld [vmem:[%s4 + $0x168] sm:$0xff]
    %v356 = vld [vmem:[%s4 + $0x170] sm:$0xff]
    %v357 = vld [vmem:[%s4 + $0x178] sm:$0xff]
    %v358 = vld [vmem:[%s4 + $0x180] sm:$0xff]
    %v359 = vld [vmem:[%s4 + $0x188] sm:$0xff]
    %v360 = vld [vmem:[%s4 + $0x190] sm:$0xff]
    %v361 = vld [vmem:[%s4 + $0x198] sm:$0xff]
    %v362 = vld [vmem:[%s4 + $0x1a0] sm:$0xff]
    %v363 = vld [vmem:[%s4 + $0x1a8] sm:$0xff]
    %v364 = vld [vmem:[%s4 + $0x1b0] sm:$0xff]
    %v365 = vld [vmem:[%s4 + $0x1b8] sm:$0xff]
    %v366 = vld [vmem:[%s4 + $0x1c0] sm:$0xff]
    %v367 = vld [vmem:[%s4 + $0x1c8] sm:$0xff]
    %v368 = vld [vmem:[%s4 + $0x1d0] sm:$0xff]
    %v369 = vld [vmem:[%s4 + $0x1d8] sm:$0xff]
    %v370 = vld [vmem:[%s4 + $0x1e0] sm:$0xff]
    %v371 = vld [vmem:[%s4 + $0x1e8] sm:$0xff]
    %v372 = vld [vmem:[%s4 + $0x1f0] sm:$0xff]
    %v373 = vld [vmem:[%s4 + $0x1f8] sm:$0xff]
    %374 = vmatprep.subr.mxu0 0.0
    %375 = vmatpush1.msra.mxu0 %v294
    %376 = vmatprep.subr.mxu0 0.0
    %377 = vmatpush1.msra.mxu0 %v295
    %378 = vmatprep.subr.mxu0 0.0
    %379 = vmatpush1.msra.mxu0 %v296
    %380 = vmatprep.subr.mxu0 0.0
    %381 = vmatpush1.msra.mxu0 %v297
    %382 = vmatprep.subr.mxu0 0.0
    %383 = vmatpush1.msra.mxu0 %v298
    %384 = vmatprep.subr.mxu0 0.0
    %385 = vmatpush1.msra.mxu0 %v299
    %386 = vmatprep.subr.mxu0 0.0
    %387 = vmatpush1.msra.mxu0 %v300
    %388 = vmatprep.subr.mxu0 0.0
    %389 = vmatpush1.msra.mxu0 %v301
    %390 = vmatprep.subr.mxu0 0.0
    %391 = vmatpush1.msra.mxu0 %v302
    %392 = vmatprep.subr.mxu0 0.0
    %393 = vmatpush1.msra.mxu0 %v303
    %394 = vmatprep.subr.mxu0 0.0
    %395 = vmatpush1.msra.mxu0 %v304
    %396 = vmatprep.subr.mxu0 0.0
    %397 = vmatpush1.msra.mxu0 %v305
    %398 = vmatprep.subr.mxu0 0.0
    %399 = vmatpush1.msra.mxu0 %v306
    %400 = vmatprep.subr.mxu0 0.0
    %401 = vmatpush1.msra.mxu0 %v307
    %402 = vmatprep.subr.mxu0 0.0
    %403 = vmatpush1.msra.mxu0 %v308
    %404 = vmatprep.subr.mxu0 0.0
    %405 = vmatpush1.msra.mxu0 %v309
    %406 = vmatprep.subr.mxu0 0.0
    %407 = vmatpush1.msra.mxu0 0.0
    %408 = vmatprep.subr.mxu0 0.0
    %409 = vmatpush1.msra.mxu0 0.0
    %410 = vmatprep.subr.mxu0 0.0
    %411 = vmatpush1.msra.mxu0 0.0
    %412 = vmatprep.subr.mxu0 0.0
    %413 = vmatpush1.msra.mxu0 0.0
    %414 = vmatprep.subr.mxu0 0.0
    %415 = vmatpush1.msra.mxu0 0.0
    %416 = vmatprep.subr.mxu0 0.0
    %417 = vmatpush1.msra.mxu0 0.0
    %418 = vmatprep.subr.mxu0 0.0
    %419 = vmatpush1.msra.mxu0 0.0
    %420 = vmatprep.subr.mxu0 0.0
    %421 = vmatpush1.msra.mxu0 0.0
    %422 = vmatprep.subr.mxu0 0.0
    %423 = vmatpush1.msra.mxu0 0.0
    %424 = vmatprep.subr.mxu0 0.0
    %425 = vmatpush1.msra.mxu0 0.0
    %426 = vmatprep.subr.mxu0 0.0
    %427 = vmatpush1.msra.mxu0 0.0
    %428 = vmatprep.subr.mxu0 0.0
    %429 = vmatpush1.msra.mxu0 0.0
    %430 = vmatprep.subr.mxu0 0.0
    %431 = vmatpush1.msra.mxu0 0.0
    %432 = vmatprep.subr.mxu0 0.0
    %433 = vmatpush1.msra.mxu0 0.0
    %434 = vmatprep.subr.mxu0 0.0
    %435 = vmatpush1.msra.mxu0 0.0
    %436 = vmatprep.subr.mxu0 0.0
    %437 = vmatpush1.msra.mxu0 0.0
    %438 = vmatprep.mubr.f32.mxu0 0.0
    %439 = vmatmul.mubr.f32.gmra.mrb[0].mxu0 %v310
    %v440 = vpop.f32.mrb[0].mxu0
    %v441 = vadd.f32 0.0, %v440
    %v442 = vpop.f32.mrb[0].mxu0
    %443 = vmatprep.mubr.f32.mxu0 0.0
    %444 = vmatmul.mubr.f32.gmra.mrb[0].mxu0 %v311
    %v445 = vpop.f32.mrb[0].mxu0
    %v446 = vadd.f32 0.0, %v445
    %v447 = vpop.f32.mrb[0].mxu0
    %448 = vmatprep.mubr.f32.mxu0 0.0
    %449 = vmatmul.mubr.f32.gmra.mrb[0].mxu0 %v312
    %v450 = vpop.f32.mrb[0].mxu0
    %v451 = vadd.f32 0.0, %v450
    %v452 = vpop.f32.mrb[0].mxu0
    %453 = vmatprep.mubr.f32.mxu0 0.0
    %454 = vmatmul.mubr.f32.gmra.mrb[0].mxu0 %v313
    %v455 = vpop.f32.mrb[0].mxu0
    %v456 = vadd.f32 0.0, %v455
    %v457 = vpop.f32.mrb[0].mxu0
    %458 = vmatprep.mubr.f32.mxu0 0.0
    %459 = vmatmul.mubr.f32.gmra.mrb[0].mxu0 %v314
    %v460 = vpop.f32.mrb[0].mxu0
    %v461 = vadd.f32 0.0, %v460
    %v462 = vpop.f32.mrb[0].mxu0
    %463 = vmatprep.mubr.f32.mxu0 0.0
    %464 = vmatmul.mubr.f32.gmra.mrb[0].mxu0 %v315
    %v465 = vpop.f32.mrb[0].mxu0
    %v466 = vadd.f32 0.0, %v465
    %v467 = vpop.f32.mrb[0].mxu0
    %468 = vmatprep.mubr.f32.mxu0 0.0
    %469 = vmatmul.mubr.f32.gmra.mrb[0].mxu0 %v316
    %v470 = vpop.f32.mrb[0].mxu0
    %v471 = vadd.f32 0.0, %v470
    %v472 = vpop.f32.mrb[0].mxu0
    %473 = vmatprep.mubr.f32.mxu0 0.0
    %474 = vmatmul.mubr.f32.gmra.mrb[0].mxu0 %v317
    %v475 = vpop.f32.mrb[0].mxu0
    %v476 = vadd.f32 0.0, %v475
    %v477 = vpop.f32.mrb[0].mxu0
    %478 = vmatprep.mubr.f32.mxu0 0.0
    %479 = vmatmul.mubr.f32.gmra.mrb[0].mxu0 %v318
    %v480 = vpop.f32.mrb[0].mxu0
    %v481 = vadd.f32 0.0, %v480
    %v482 = vpop.f32.mrb[0].mxu0
    %483 = vmatprep.mubr.f32.mxu0 0.0
    %484 = vmatmul.mubr.f32.gmra.mrb[0].mxu0 %v319
    %v485 = vpop.f32.mrb[0].mxu0
    %v486 = vadd.f32 0.0, %v485
    %v487 = vpop.f32.mrb[0].mxu0
    %488 = vmatprep.mubr.f32.mxu0 0.0
    %489 = vmatmul.mubr.f32.gmra.mrb[0].mxu0 %v320
    %v490 = vpop.f32.mrb[0].mxu0
    %v491 = vadd.f32 0.0, %v490
    %v492 = vpop.f32.mrb[0].mxu0
    %493 = vmatprep.mubr.f32.mxu0 0.0
    %494 = vmatmul.mubr.f32.gmra.mrb[0].mxu0 %v321
    %v495 = vpop.f32.mrb[0].mxu0
    %v496 = vadd.f32 0.0, %v495
    %v497 = vpop.f32.mrb[0].mxu0
    %498 = vmatprep.mubr.f32.mxu0 0.0
    %499 = vmatmul.mubr.f32.gmra.mrb[0].mxu0 %v322
    %v500 = vpop.f32.mrb[0].mxu0
    %v501 = vadd.f32 0.0, %v500
    %v502 = vpop.f32.mrb[0].mxu0
    %503 = vmatprep.mubr.f32.mxu0 0.0
    %504 = vmatmul.mubr.f32.gmra.mrb[0].mxu0 %v323
    %v505 = vpop.f32.mrb[0].mxu0
    %v506 = vadd.f32 0.0, %v505
    %v507 = vpop.f32.mrb[0].mxu0
    %508 = vmatprep.mubr.f32.mxu0 0.0
    %509 = vmatmul.mubr.f32.gmra.mrb[0].mxu0 %v324
    %v510 = vpop.f32.mrb[0].mxu0
    %v511 = vadd.f32 0.0, %v510
    %v512 = vpop.f32.mrb[0].mxu0
    %513 = vmatprep.mubr.f32.mxu0 0.0
    %514 = vmatmul.mubr.f32.gmra.mrb[0].mxu0 %v325
    %v515 = vpop.f32.mrb[0].mxu0
    %v516 = vadd.f32 0.0, %v515
    %v517 = vpop.f32.mrb[0].mxu0
    %518 = vmatprep.mubr.f32.mxu0 0.0
    %519 = vmatmul.mubr.f32.gmra.mrb[0].mxu0 %v326
    %v520 = vpop.f32.mrb[0].mxu0
    %v521 = vadd.f32 0.0, %v520
    %v522 = vpop.f32.mrb[0].mxu0
    %523 = vmatprep.mubr.f32.mxu0 0.0
    %524 = vmatmul.mubr.f32.gmra.mrb[0].mxu0 %v327
    %v525 = vpop.f32.mrb[0].mxu0
    %v526 = vadd.f32 0.0, %v525
    %v527 = vpop.f32.mrb[0].mxu0
    %528 = vmatprep.mubr.f32.mxu0 0.0
    %529 = vmatmul.mubr.f32.gmra.mrb[0].mxu0 %v328
    %v530 = vpop.f32.mrb[0].mxu0
    %v531 = vadd.f32 0.0, %v530
    %v532 = vpop.f32.mrb[0].mxu0
    %533 = vmatprep.mubr.f32.mxu0 0.0
    %534 = vmatmul.mubr.f32.gmra.mrb[0].mxu0 %v329
    %v535 = vpop.f32.mrb[0].mxu0
    %v536 = vadd.f32 0.0, %v535
    %v537 = vpop.f32.mrb[0].mxu0
    %538 = vmatprep.mubr.f32.mxu0 0.0
    %539 = vmatmul.mubr.f32.gmra.mrb[0].mxu0 %v330
    %v540 = vpop.f32.mrb[0].mxu0
    %v541 = vadd.f32 0.0, %v540
    %v542 = vpop.f32.mrb[0].mxu0
    %543 = vmatprep.mubr.f32.mxu0 0.0
    %544 = vmatmul.mubr.f32.gmra.mrb[0].mxu0 %v331
    %v545 = vpop.f32.mrb[0].mxu0
    %v546 = vadd.f32 0.0, %v545
    %v547 = vpop.f32.mrb[0].mxu0
    %548 = vmatprep.mubr.f32.mxu0 0.0
    %549 = vmatmul.mubr.f32.gmra.mrb[0].mxu0 %v332
    %v550 = vpop.f32.mrb[0].mxu0
    %v551 = vadd.f32 0.0, %v550
    %v552 = vpop.f32.mrb[0].mxu0
    %553 = vmatprep.mubr.f32.mxu0 0.0
    %554 = vmatmul.mubr.f32.gmra.mrb[0].mxu0 %v333
    %v555 = vpop.f32.mrb[0].mxu0
    %v556 = vadd.f32 0.0, %v555
    %v557 = vpop.f32.mrb[0].mxu0
    %558 = vmatprep.mubr.f32.mxu0 0.0
    %559 = vmatmul.mubr.f32.gmra.mrb[0].mxu0 %v334
    %v560 = vpop.f32.mrb[0].mxu0
    %v561 = vadd.f32 0.0, %v560
    %v562 = vpop.f32.mrb[0].mxu0
    %563 = vmatprep.mubr.f32.mxu0 0.0
    %564 = vmatmul.mubr.f32.gmra.mrb[0].mxu0 %v335
    %v565 = vpop.f32.mrb[0].mxu0
    %v566 = vadd.f32 0.0, %v565
    %v567 = vpop.f32.mrb[0].mxu0
    %568 = vmatprep.mubr.f32.mxu0 0.0
    %569 = vmatmul.mubr.f32.gmra.mrb[0].mxu0 %v336
    %v570 = vpop.f32.mrb[0].mxu0
    %v571 = vadd.f32 0.0, %v570
    %v572 = vpop.f32.mrb[0].mxu0
    %573 = vmatprep.mubr.f32.mxu0 0.0
    %574 = vmatmul.mubr.f32.gmra.mrb[0].mxu0 %v337
    %v575 = vpop.f32.mrb[0].mxu0
    %v576 = vadd.f32 0.0, %v575
    %v577 = vpop.f32.mrb[0].mxu0
    %578 = vmatprep.mubr.f32.mxu0 0.0
    %579 = vmatmul.mubr.f32.gmra.mrb[0].mxu0 %v338
    %v580 = vpop.f32.mrb[0].mxu0
    %v581 = vadd.f32 0.0, %v580
    %v582 = vpop.f32.mrb[0].mxu0
    %583 = vmatprep.mubr.f32.mxu0 0.0
    %584 = vmatmul.mubr.f32.gmra.mrb[0].mxu0 %v339
    %v585 = vpop.f32.mrb[0].mxu0
    %v586 = vadd.f32 0.0, %v585
    %v587 = vpop.f32.mrb[0].mxu0
    %588 = vmatprep.mubr.f32.mxu0 0.0
    %589 = vmatmul.mubr.f32.gmra.mrb[0].mxu0 %v340
    %v590 = vpop.f32.mrb[0].mxu0
    %v591 = vadd.f32 0.0, %v590
    %v592 = vpop.f32.mrb[0].mxu0
    %593 = vmatprep.mubr.f32.mxu0 0.0
    %594 = vmatmul.mubr.f32.gmra.mrb[0].mxu0 %v341
    %v595 = vpop.f32.mrb[0].mxu0
    %v596 = vadd.f32 0.0, %v595
    %v597 = vpop.f32.mrb[0].mxu0
    %598 = vmatprep.mubr.f32.mxu0 0.0
    %599 = vmatmul.mubr.f32.gmra.mrb[0].mxu0 %v342
    %v600 = vpop.f32.mrb[0].mxu0
    %v601 = vadd.f32 0.0, %v600
    %v602 = vpop.f32.mrb[0].mxu0
    %603 = vmatprep.mubr.f32.mxu0 0.0
    %604 = vmatmul.mubr.f32.gmra.mrb[0].mxu0 %v343
    %v605 = vpop.f32.mrb[0].mxu0
    %v606 = vadd.f32 0.0, %v605
    %v607 = vpop.f32.mrb[0].mxu0
    %608 = vmatprep.mubr.f32.mxu0 0.0
    %609 = vmatmul.mubr.f32.gmra.mrb[0].mxu0 %v344
    %v610 = vpop.f32.mrb[0].mxu0
    %v611 = vadd.f32 0.0, %v610
    %v612 = vpop.f32.mrb[0].mxu0
    %613 = vmatprep.mubr.f32.mxu0 0.0
    %614 = vmatmul.mubr.f32.gmra.mrb[0].mxu0 %v345
    %v615 = vpop.f32.mrb[0].mxu0
    %v616 = vadd.f32 0.0, %v615
    %v617 = vpop.f32.mrb[0].mxu0
    %618 = vmatprep.mubr.f32.mxu0 0.0
    %619 = vmatmul.mubr.f32.gmra.mrb[0].mxu0 %v346
    %v620 = vpop.f32.mrb[0].mxu0
    %v621 = vadd.f32 0.0, %v620
    %v622 = vpop.f32.mrb[0].mxu0
    %623 = vmatprep.mubr.f32.mxu0 0.0
    %624 = vmatmul.mubr.f32.gmra.mrb[0].mxu0 %v347
    %v625 = vpop.f32.mrb[0].mxu0
    %v626 = vadd.f32 0.0, %v625
    %v627 = vpop.f32.mrb[0].mxu0
    %628 = vmatprep.mubr.f32.mxu0 0.0
    %629 = vmatmul.mubr.f32.gmra.mrb[0].mxu0 %v348
    %v630 = vpop.f32.mrb[0].mxu0
    %v631 = vadd.f32 0.0, %v630
    %v632 = vpop.f32.mrb[0].mxu0
    %633 = vmatprep.mubr.f32.mxu0 0.0
    %634 = vmatmul.mubr.f32.gmra.mrb[0].mxu0 %v349
    %v635 = vpop.f32.mrb[0].mxu0
    %v636 = vadd.f32 0.0, %v635
    %v637 = vpop.f32.mrb[0].mxu0
    %638 = vmatprep.mubr.f32.mxu0 0.0
    %639 = vmatmul.mubr.f32.gmra.mrb[0].mxu0 %v350
    %v640 = vpop.f32.mrb[0].mxu0
    %v641 = vadd.f32 0.0, %v640
    %v642 = vpop.f32.mrb[0].mxu0
    %643 = vmatprep.mubr.f32.mxu0 0.0
    %644 = vmatmul.mubr.f32.gmra.mrb[0].mxu0 %v351
    %v645 = vpop.f32.mrb[0].mxu0
    %v646 = vadd.f32 0.0, %v645
    %v647 = vpop.f32.mrb[0].mxu0
    %648 = vmatprep.mubr.f32.mxu0 0.0
    %649 = vmatmul.mubr.f32.gmra.mrb[0].mxu0 %v352
    %v650 = vpop.f32.mrb[0].mxu0
    %v651 = vadd.f32 0.0, %v650
    %v652 = vpop.f32.mrb[0].mxu0
    %653 = vmatprep.mubr.f32.mxu0 0.0
    %654 = vmatmul.mubr.f32.gmra.mrb[0].mxu0 %v353
    %v655 = vpop.f32.mrb[0].mxu0
    %v656 = vadd.f32 0.0, %v655
    %v657 = vpop.f32.mrb[0].mxu0
    %658 = vmatprep.mubr.f32.mxu0 0.0
    %659 = vmatmul.mubr.f32.gmra.mrb[0].mxu0 %v354
    %v660 = vpop.f32.mrb[0].mxu0
    %v661 = vadd.f32 0.0, %v660
    %v662 = vpop.f32.mrb[0].mxu0
    %663 = vmatprep.mubr.f32.mxu0 0.0
    %664 = vmatmul.mubr.f32.gmra.mrb[0].mxu0 %v355
    %v665 = vpop.f32.mrb[0].mxu0
    %v666 = vadd.f32 0.0, %v665
    %v667 = vpop.f32.mrb[0].mxu0
    %668 = vmatprep.mubr.f32.mxu0 0.0
    %669 = vmatmul.mubr.f32.gmra.mrb[0].mxu0 %v356
    %v670 = vpop.f32.mrb[0].mxu0
    %v671 = vadd.f32 0.0, %v670
    %v672 = vpop.f32.mrb[0].mxu0
    %673 = vmatprep.mubr.f32.mxu0 0.0
    %674 = vmatmul.mubr.f32.gmra.mrb[0].mxu0 %v357
    %v675 = vpop.f32.mrb[0].mxu0
    %v676 = vadd.f32 0.0, %v675
    %v677 = vpop.f32.mrb[0].mxu0
    %678 = vmatprep.mubr.f32.mxu0 0.0
    %679 = vmatmul.mubr.f32.gmra.mrb[0].mxu0 %v358
    %v680 = vpop.f32.mrb[0].mxu0
    %v681 = vadd.f32 0.0, %v680
    %v682 = vpop.f32.mrb[0].mxu0
    %683 = vmatprep.mubr.f32.mxu0 0.0
    %684 = vmatmul.mubr.f32.gmra.mrb[0].mxu0 %v359
    %v685 = vpop.f32.mrb[0].mxu0
    %v686 = vadd.f32 0.0, %v685
    %v687 = vpop.f32.mrb[0].mxu0
    %688 = vmatprep.mubr.f32.mxu0 0.0
    %689 = vmatmul.mubr.f32.gmra.mrb[0].mxu0 %v360
    %v690 = vpop.f32.mrb[0].mxu0
    %v691 = vadd.f32 0.0, %v690
    %v692 = vpop.f32.mrb[0].mxu0
    %693 = vmatprep.mubr.f32.mxu0 0.0
    %694 = vmatmul.mubr.f32.gmra.mrb[0].mxu0 %v361
    %v695 = vpop.f32.mrb[0].mxu0
    %v696 = vadd.f32 0.0, %v695
    %v697 = vpop.f32.mrb[0].mxu0
    %698 = vmatprep.mubr.f32.mxu0 0.0
    %699 = vmatmul.mubr.f32.gmra.mrb[0].mxu0 %v362
    %v700 = vpop.f32.mrb[0].mxu0
    %v701 = vadd.f32 0.0, %v700
    %v702 = vpop.f32.mrb[0].mxu0
    %703 = vmatprep.mubr.f32.mxu0 0.0
    %704 = vmatmul.mubr.f32.gmra.mrb[0].mxu0 %v363
    %v705 = vpop.f32.mrb[0].mxu0
    %v706 = vadd.f32 0.0, %v705
    %v707 = vpop.f32.mrb[0].mxu0
    %708 = vmatprep.mubr.f32.mxu0 0.0
    %709 = vmatmul.mubr.f32.gmra.mrb[0].mxu0 %v364
    %v710 = vpop.f32.mrb[0].mxu0
    %v711 = vadd.f32 0.0, %v710
    %v712 = vpop.f32.mrb[0].mxu0
    %713 = vmatprep.mubr.f32.mxu0 0.0
    %714 = vmatmul.mubr.f32.gmra.mrb[0].mxu0 %v365
    %v715 = vpop.f32.mrb[0].mxu0
    %v716 = vadd.f32 0.0, %v715
    %v717 = vpop.f32.mrb[0].mxu0
    %718 = vmatprep.mubr.f32.mxu0 0.0
    %719 = vmatmul.mubr.f32.gmra.mrb[0].mxu0 %v366
    %v720 = vpop.f32.mrb[0].mxu0
    %v721 = vadd.f32 0.0, %v720
    %v722 = vpop.f32.mrb[0].mxu0
    %723 = vmatprep.mubr.f32.mxu0 0.0
    %724 = vmatmul.mubr.f32.gmra.mrb[0].mxu0 %v367
    %v725 = vpop.f32.mrb[0].mxu0
    %v726 = vadd.f32 0.0, %v725
    %v727 = vpop.f32.mrb[0].mxu0
    %728 = vmatprep.mubr.f32.mxu0 0.0
    %729 = vmatmul.mubr.f32.gmra.mrb[0].mxu0 %v368
    %v730 = vpop.f32.mrb[0].mxu0
    %v731 = vadd.f32 0.0, %v730
    %v732 = vpop.f32.mrb[0].mxu0
    %733 = vmatprep.mubr.f32.mxu0 0.0
    %734 = vmatmul.mubr.f32.gmra.mrb[0].mxu0 %v369
    %v735 = vpop.f32.mrb[0].mxu0
    %v736 = vadd.f32 0.0, %v735
    %v737 = vpop.f32.mrb[0].mxu0
    %738 = vmatprep.mubr.f32.mxu0 0.0
    %739 = vmatmul.mubr.f32.gmra.mrb[0].mxu0 %v370
    %v740 = vpop.f32.mrb[0].mxu0
    %v741 = vadd.f32 0.0, %v740
    %v742 = vpop.f32.mrb[0].mxu0
    %743 = vmatprep.mubr.f32.mxu0 0.0
    %744 = vmatmul.mubr.f32.gmra.mrb[0].mxu0 %v371
    %v745 = vpop.f32.mrb[0].mxu0
    %v746 = vadd.f32 0.0, %v745
    %v747 = vpop.f32.mrb[0].mxu0
    %748 = vmatprep.mubr.f32.mxu0 0.0
    %749 = vmatmul.mubr.f32.gmra.mrb[0].mxu0 %v372
    %v750 = vpop.f32.mrb[0].mxu0
    %v751 = vadd.f32 0.0, %v750
    %v752 = vpop.f32.mrb[0].mxu0
    %753 = vmatprep.mubr.f32.mxu0 0.0
    %754 = vmatmul.mubr.f32.gmra.mrb[0].mxu0 %v373
    %v755 = vpop.f32.mrb[0].mxu0
    %v756 = vadd.f32 0.0, %v755
    %v757 = vpop.f32.mrb[0].mxu0
    %758 = vdwg.mxu0
    %v759 = vld [vmem:[%s6] sm:$0x1]
    %v761 = vlaneseq
    %v762 = vshrl.u32 %v761, 7
    %v763 = vsub.s32 0, %v762
    %v764 = vrot.slane %v759, %v763
    %v766 = vmul.f32 %v294, %v764
    %v767 = vmul.f32 %v295, %v764
    %v768 = vmul.f32 %v296, %v764
    %v769 = vmul.f32 %v297, %v764
    %v770 = vmul.f32 %v298, %v764
    %v771 = vmul.f32 %v299, %v764
    %v772 = vmul.f32 %v300, %v764
    %v773 = vmul.f32 %v301, %v764
    %v774 = vmul.f32 %v302, %v764
    %v775 = vmul.f32 %v303, %v764
    %v776 = vmul.f32 %v304, %v764
    %v777 = vmul.f32 %v305, %v764
    %v778 = vmul.f32 %v306, %v764
    %v779 = vmul.f32 %v307, %v764
    %v780 = vmul.f32 %v308, %v764
    %v781 = vmul.f32 %v309, %v764
    %782 = vadd.xlane.f32.xlu0 %v766
    %v783 = vpop.xlane.xlu0 %782
    %784 = vadd.xlane.f32.xlu0 %v767
    %v785 = vpop.xlane.xlu0 %784
    %786 = vadd.xlane.f32.xlu0 %v768
    %v787 = vpop.xlane.xlu0 %786
    %788 = vadd.xlane.f32.xlu0 %v769
    %v789 = vpop.xlane.xlu0 %788
    %790 = vadd.xlane.f32.xlu0 %v770
    %v791 = vpop.xlane.xlu0 %790
    %792 = vadd.xlane.f32.xlu0 %v771
    %v793 = vpop.xlane.xlu0 %792
    %794 = vadd.xlane.f32.xlu0 %v772
    %v795 = vpop.xlane.xlu0 %794
    %796 = vadd.xlane.f32.xlu0 %v773
    %v797 = vpop.xlane.xlu0 %796
    %798 = vadd.xlane.f32.xlu0 %v774
    %v799 = vpop.xlane.xlu0 %798
    %800 = vadd.xlane.f32.xlu0 %v775
    %v801 = vpop.xlane.xlu0 %800
    %802 = vadd.xlane.f32.xlu0 %v776
    %v803 = vpop.xlane.xlu0 %802
    %804 = vadd.xlane.f32.xlu0 %v777
    %v805 = vpop.xlane.xlu0 %804
    %806 = vadd.xlane.f32.xlu0 %v778
    %v807 = vpop.xlane.xlu0 %806
    %808 = vadd.xlane.f32.xlu0 %v779
    %v809 = vpop.xlane.xlu0 %808
    %810 = vadd.xlane.f32.xlu0 %v780
    %v811 = vpop.xlane.xlu0 %810
    %812 = vadd.xlane.f32.xlu0 %v781
    %v813 = vpop.xlane.xlu0 %812
    %814 = vmatprep.subr.mxu0 0.0
    %815 = vmatpush1.msra.mxu0 %v783
    %816 = vmatprep.subr.mxu0 0.0
    %817 = vmatpush1.msra.mxu0 %v785
    %818 = vmatprep.subr.mxu0 0.0
    %819 = vmatpush1.msra.mxu0 %v787
    %820 = vmatprep.subr.mxu0 0.0
    %821 = vmatpush1.msra.mxu0 %v789
    %822 = vmatprep.subr.mxu0 0.0
    %823 = vmatpush1.msra.mxu0 %v791
    %824 = vmatprep.subr.mxu0 0.0
    %825 = vmatpush1.msra.mxu0 %v793
    %826 = vmatprep.subr.mxu0 0.0
    %827 = vmatpush1.msra.mxu0 %v795
    %828 = vmatprep.subr.mxu0 0.0
    %829 = vmatpush1.msra.mxu0 %v797
    %830 = vmatprep.subr.mxu0 0.0
    %831 = vmatpush1.msra.mxu0 %v799
    %832 = vmatprep.subr.mxu0 0.0
    %833 = vmatpush1.msra.mxu0 %v801
    %834 = vmatprep.subr.mxu0 0.0
    %835 = vmatpush1.msra.mxu0 %v803
    %836 = vmatprep.subr.mxu0 0.0
    %837 = vmatpush1.msra.mxu0 %v805
    %838 = vmatprep.subr.mxu0 0.0
    %839 = vmatpush1.msra.mxu0 %v807
    %840 = vmatprep.subr.mxu0 0.0
    %841 = vmatpush1.msra.mxu0 %v809
    %842 = vmatprep.subr.mxu0 0.0
    %843 = vmatpush1.msra.mxu0 %v811
    %844 = vmatprep.subr.mxu0 0.0
    %845 = vmatpush1.msra.mxu0 %v813
    %846 = vmatprep.subr.mxu0 0.0
    %847 = vmatpush1.msra.mxu0 0.0
    %848 = vmatprep.subr.mxu0 0.0
    %849 = vmatpush1.msra.mxu0 0.0
    %850 = vmatprep.subr.mxu0 0.0
    %851 = vmatpush1.msra.mxu0 0.0
    %852 = vmatprep.subr.mxu0 0.0
    %853 = vmatpush1.msra.mxu0 0.0
    %854 = vmatprep.subr.mxu0 0.0
    %855 = vmatpush1.msra.mxu0 0.0
    %856 = vmatprep.subr.mxu0 0.0
    %857 = vmatpush1.msra.mxu0 0.0
    %858 = vmatprep.subr.mxu0 0.0
    %859 = vmatpush1.msra.mxu0 0.0
    %860 = vmatprep.subr.mxu0 0.0
    %861 = vmatpush1.msra.mxu0 0.0
    %862 = vmatprep.subr.mxu0 0.0
    %863 = vmatpush1.msra.mxu0 0.0
    %864 = vmatprep.subr.mxu0 0.0
    %865 = vmatpush1.msra.mxu0 0.0
    %866 = vmatprep.subr.mxu0 0.0
    %867 = vmatpush1.msra.mxu0 0.0
    %868 = vmatprep.subr.mxu0 0.0
    %869 = vmatpush1.msra.mxu0 0.0
    %870 = vmatprep.subr.mxu0 0.0
    %871 = vmatpush1.msra.mxu0 0.0
    %872 = vmatprep.subr.mxu0 0.0
    %873 = vmatpush1.msra.mxu0 0.0
    %874 = vmatprep.subr.mxu0 0.0
    %875 = vmatpush1.msra.mxu0 0.0
    %876 = vmatprep.subr.mxu0 0.0
    %877 = vmatpush1.msra.mxu0 0.0
    %878 = vmatprep.mubr.f32.mxu0 0.0
    %879 = vmatmul.mubr.f32.gmra.mrb[0].mxu0 %v310
    %v880 = vpop.f32.mrb[0].mxu0
    %v881 = vadd.f32 0.0, %v880
    %v882 = vpop.f32.mrb[0].mxu0
    %883 = vmatprep.mubr.f32.mxu0 0.0
    %884 = vmatmul.mubr.f32.gmra.mrb[0].mxu0 %v311
    %v885 = vpop.f32.mrb[0].mxu0
    %v886 = vadd.f32 0.0, %v885
    %v887 = vpop.f32.mrb[0].mxu0
    %888 = vmatprep.mubr.f32.mxu0 0.0
    %889 = vmatmul.mubr.f32.gmra.mrb[0].mxu0 %v312
    %v890 = vpop.f32.mrb[0].mxu0
    %v891 = vadd.f32 0.0, %v890
    %v892 = vpop.f32.mrb[0].mxu0
    %893 = vmatprep.mubr.f32.mxu0 0.0
    %894 = vmatmul.mubr.f32.gmra.mrb[0].mxu0 %v313
    %v895 = vpop.f32.mrb[0].mxu0
    %v896 = vadd.f32 0.0, %v895
    %v897 = vpop.f32.mrb[0].mxu0
    %898 = vmatprep.mubr.f32.mxu0 0.0
    %899 = vmatmul.mubr.f32.gmra.mrb[0].mxu0 %v314
    %v900 = vpop.f32.mrb[0].mxu0
    %v901 = vadd.f32 0.0, %v900
    %v902 = vpop.f32.mrb[0].mxu0
    %903 = vmatprep.mubr.f32.mxu0 0.0
    %904 = vmatmul.mubr.f32.gmra.mrb[0].mxu0 %v315
    %v905 = vpop.f32.mrb[0].mxu0
    %v906 = vadd.f32 0.0, %v905
    %v907 = vpop.f32.mrb[0].mxu0
    %908 = vmatprep.mubr.f32.mxu0 0.0
    %909 = vmatmul.mubr.f32.gmra.mrb[0].mxu0 %v316
    %v910 = vpop.f32.mrb[0].mxu0
    %v911 = vadd.f32 0.0, %v910
    %v912 = vpop.f32.mrb[0].mxu0
    %913 = vmatprep.mubr.f32.mxu0 0.0
    %914 = vmatmul.mubr.f32.gmra.mrb[0].mxu0 %v317
    %v915 = vpop.f32.mrb[0].mxu0
    %v916 = vadd.f32 0.0, %v915
    %v917 = vpop.f32.mrb[0].mxu0
    %918 = vmatprep.mubr.f32.mxu0 0.0
    %919 = vmatmul.mubr.f32.gmra.mrb[0].mxu0 %v318
    %v920 = vpop.f32.mrb[0].mxu0
    %v921 = vadd.f32 0.0, %v920
    %v922 = vpop.f32.mrb[0].mxu0
    %923 = vmatprep.mubr.f32.mxu0 0.0
    %924 = vmatmul.mubr.f32.gmra.mrb[0].mxu0 %v319
    %v925 = vpop.f32.mrb[0].mxu0
    %v926 = vadd.f32 0.0, %v925
    %v927 = vpop.f32.mrb[0].mxu0
    %928 = vmatprep.mubr.f32.mxu0 0.0
    %929 = vmatmul.mubr.f32.gmra.mrb[0].mxu0 %v320
    %v930 = vpop.f32.mrb[0].mxu0
    %v931 = vadd.f32 0.0, %v930
    %v932 = vpop.f32.mrb[0].mxu0
    %933 = vmatprep.mubr.f32.mxu0 0.0
    %934 = vmatmul.mubr.f32.gmra.mrb[0].mxu0 %v321
    %v935 = vpop.f32.mrb[0].mxu0
    %v936 = vadd.f32 0.0, %v935
    %v937 = vpop.f32.mrb[0].mxu0
    %938 = vmatprep.mubr.f32.mxu0 0.0
    %939 = vmatmul.mubr.f32.gmra.mrb[0].mxu0 %v322
    %v940 = vpop.f32.mrb[0].mxu0
    %v941 = vadd.f32 0.0, %v940
    %v942 = vpop.f32.mrb[0].mxu0
    %943 = vmatprep.mubr.f32.mxu0 0.0
    %944 = vmatmul.mubr.f32.gmra.mrb[0].mxu0 %v323
    %v945 = vpop.f32.mrb[0].mxu0
    %v946 = vadd.f32 0.0, %v945
    %v947 = vpop.f32.mrb[0].mxu0
    %948 = vmatprep.mubr.f32.mxu0 0.0
    %949 = vmatmul.mubr.f32.gmra.mrb[0].mxu0 %v324
    %v950 = vpop.f32.mrb[0].mxu0
    %v951 = vadd.f32 0.0, %v950
    %v952 = vpop.f32.mrb[0].mxu0
    %953 = vmatprep.mubr.f32.mxu0 0.0
    %954 = vmatmul.mubr.f32.gmra.mrb[0].mxu0 %v325
    %v955 = vpop.f32.mrb[0].mxu0
    %v956 = vadd.f32 0.0, %v955
    %v957 = vpop.f32.mrb[0].mxu0
    %958 = vmatprep.mubr.f32.mxu0 0.0
    %959 = vmatmul.mubr.f32.gmra.mrb[0].mxu0 %v326
    %v960 = vpop.f32.mrb[0].mxu0
    %v961 = vadd.f32 0.0, %v960
    %v962 = vpop.f32.mrb[0].mxu0
    %963 = vmatprep.mubr.f32.mxu0 0.0
    %964 = vmatmul.mubr.f32.gmra.mrb[0].mxu0 %v327
    %v965 = vpop.f32.mrb[0].mxu0
    %v966 = vadd.f32 0.0, %v965
    %v967 = vpop.f32.mrb[0].mxu0
    %968 = vmatprep.mubr.f32.mxu0 0.0
    %969 = vmatmul.mubr.f32.gmra.mrb[0].mxu0 %v328
    %v970 = vpop.f32.mrb[0].mxu0
    %v971 = vadd.f32 0.0, %v970
    %v972 = vpop.f32.mrb[0].mxu0
    %973 = vmatprep.mubr.f32.mxu0 0.0
    %974 = vmatmul.mubr.f32.gmra.mrb[0].mxu0 %v329
    %v975 = vpop.f32.mrb[0].mxu0
    %v976 = vadd.f32 0.0, %v975
    %v977 = vpop.f32.mrb[0].mxu0
    %978 = vmatprep.mubr.f32.mxu0 0.0
    %979 = vmatmul.mubr.f32.gmra.mrb[0].mxu0 %v330
    %v980 = vpop.f32.mrb[0].mxu0
    %v981 = vadd.f32 0.0, %v980
    %v982 = vpop.f32.mrb[0].mxu0
    %983 = vmatprep.mubr.f32.mxu0 0.0
    %984 = vmatmul.mubr.f32.gmra.mrb[0].mxu0 %v331
    %v985 = vpop.f32.mrb[0].mxu0
    %v986 = vadd.f32 0.0, %v985
    %v987 = vpop.f32.mrb[0].mxu0
    %988 = vmatprep.mubr.f32.mxu0 0.0
    %989 = vmatmul.mubr.f32.gmra.mrb[0].mxu0 %v332
    %v990 = vpop.f32.mrb[0].mxu0
    %v991 = vadd.f32 0.0, %v990
    %v992 = vpop.f32.mrb[0].mxu0
    %993 = vmatprep.mubr.f32.mxu0 0.0
    %994 = vmatmul.mubr.f32.gmra.mrb[0].mxu0 %v333
    %v995 = vpop.f32.mrb[0].mxu0
    %v996 = vadd.f32 0.0, %v995
    %v997 = vpop.f32.mrb[0].mxu0
    %998 = vmatprep.mubr.f32.mxu0 0.0
    %999 = vmatmul.mubr.f32.gmra.mrb[0].mxu0 %v334
    %v1000 = vpop.f32.mrb[0].mxu0
    %v1001 = vadd.f32 0.0, %v1000
    %v1002 = vpop.f32.mrb[0].mxu0
    %1003 = vmatprep.mubr.f32.mxu0 0.0
    %1004 = vmatmul.mubr.f32.gmra.mrb[0].mxu0 %v335
    %v1005 = vpop.f32.mrb[0].mxu0
    %v1006 = vadd.f32 0.0, %v1005
    %v1007 = vpop.f32.mrb[0].mxu0
    %1008 = vmatprep.mubr.f32.mxu0 0.0
    %1009 = vmatmul.mubr.f32.gmra.mrb[0].mxu0 %v336
    %v1010 = vpop.f32.mrb[0].mxu0
    %v1011 = vadd.f32 0.0, %v1010
    %v1012 = vpop.f32.mrb[0].mxu0
    %1013 = vmatprep.mubr.f32.mxu0 0.0
    %1014 = vmatmul.mubr.f32.gmra.mrb[0].mxu0 %v337
    %v1015 = vpop.f32.mrb[0].mxu0
    %v1016 = vadd.f32 0.0, %v1015
    %v1017 = vpop.f32.mrb[0].mxu0
    %1018 = vmatprep.mubr.f32.mxu0 0.0
    %1019 = vmatmul.mubr.f32.gmra.mrb[0].mxu0 %v338
    %v1020 = vpop.f32.mrb[0].mxu0
    %v1021 = vadd.f32 0.0, %v1020
    %v1022 = vpop.f32.mrb[0].mxu0
    %1023 = vmatprep.mubr.f32.mxu0 0.0
    %1024 = vmatmul.mubr.f32.gmra.mrb[0].mxu0 %v339
    %v1025 = vpop.f32.mrb[0].mxu0
    %v1026 = vadd.f32 0.0, %v1025
    %v1027 = vpop.f32.mrb[0].mxu0
    %1028 = vmatprep.mubr.f32.mxu0 0.0
    %1029 = vmatmul.mubr.f32.gmra.mrb[0].mxu0 %v340
    %v1030 = vpop.f32.mrb[0].mxu0
    %v1031 = vadd.f32 0.0, %v1030
    %v1032 = vpop.f32.mrb[0].mxu0
    %1033 = vmatprep.mubr.f32.mxu0 0.0
    %1034 = vmatmul.mubr.f32.gmra.mrb[0].mxu0 %v341
    %v1035 = vpop.f32.mrb[0].mxu0
    %v1036 = vadd.f32 0.0, %v1035
    %v1037 = vpop.f32.mrb[0].mxu0
    %1038 = vmatprep.mubr.f32.mxu0 0.0
    %1039 = vmatmul.mubr.f32.gmra.mrb[0].mxu0 %v342
    %v1040 = vpop.f32.mrb[0].mxu0
    %v1041 = vadd.f32 0.0, %v1040
    %v1042 = vpop.f32.mrb[0].mxu0
    %1043 = vmatprep.mubr.f32.mxu0 0.0
    %1044 = vmatmul.mubr.f32.gmra.mrb[0].mxu0 %v343
    %v1045 = vpop.f32.mrb[0].mxu0
    %v1046 = vadd.f32 0.0, %v1045
    %v1047 = vpop.f32.mrb[0].mxu0
    %1048 = vmatprep.mubr.f32.mxu0 0.0
    %1049 = vmatmul.mubr.f32.gmra.mrb[0].mxu0 %v344
    %v1050 = vpop.f32.mrb[0].mxu0
    %v1051 = vadd.f32 0.0, %v1050
    %v1052 = vpop.f32.mrb[0].mxu0
    %1053 = vmatprep.mubr.f32.mxu0 0.0
    %1054 = vmatmul.mubr.f32.gmra.mrb[0].mxu0 %v345
    %v1055 = vpop.f32.mrb[0].mxu0
    %v1056 = vadd.f32 0.0, %v1055
    %v1057 = vpop.f32.mrb[0].mxu0
    %1058 = vmatprep.mubr.f32.mxu0 0.0
    %1059 = vmatmul.mubr.f32.gmra.mrb[0].mxu0 %v346
    %v1060 = vpop.f32.mrb[0].mxu0
    %v1061 = vadd.f32 0.0, %v1060
    %v1062 = vpop.f32.mrb[0].mxu0
    %1063 = vmatprep.mubr.f32.mxu0 0.0
    %1064 = vmatmul.mubr.f32.gmra.mrb[0].mxu0 %v347
    %v1065 = vpop.f32.mrb[0].mxu0
    %v1066 = vadd.f32 0.0, %v1065
    %v1067 = vpop.f32.mrb[0].mxu0
    %1068 = vmatprep.mubr.f32.mxu0 0.0
    %1069 = vmatmul.mubr.f32.gmra.mrb[0].mxu0 %v348
    %v1070 = vpop.f32.mrb[0].mxu0
    %v1071 = vadd.f32 0.0, %v1070
    %v1072 = vpop.f32.mrb[0].mxu0
    %1073 = vmatprep.mubr.f32.mxu0 0.0
    %1074 = vmatmul.mubr.f32.gmra.mrb[0].mxu0 %v349
    %v1075 = vpop.f32.mrb[0].mxu0
    %v1076 = vadd.f32 0.0, %v1075
    %v1077 = vpop.f32.mrb[0].mxu0
    %1078 = vmatprep.mubr.f32.mxu0 0.0
    %1079 = vmatmul.mubr.f32.gmra.mrb[0].mxu0 %v350
    %v1080 = vpop.f32.mrb[0].mxu0
    %v1081 = vadd.f32 0.0, %v1080
    %v1082 = vpop.f32.mrb[0].mxu0
    %1083 = vmatprep.mubr.f32.mxu0 0.0
    %1084 = vmatmul.mubr.f32.gmra.mrb[0].mxu0 %v351
    %v1085 = vpop.f32.mrb[0].mxu0
    %v1086 = vadd.f32 0.0, %v1085
    %v1087 = vpop.f32.mrb[0].mxu0
    %1088 = vmatprep.mubr.f32.mxu0 0.0
    %1089 = vmatmul.mubr.f32.gmra.mrb[0].mxu0 %v352
    %v1090 = vpop.f32.mrb[0].mxu0
    %v1091 = vadd.f32 0.0, %v1090
    %v1092 = vpop.f32.mrb[0].mxu0
    %1093 = vmatprep.mubr.f32.mxu0 0.0
    %1094 = vmatmul.mubr.f32.gmra.mrb[0].mxu0 %v353
    %v1095 = vpop.f32.mrb[0].mxu0
    %v1096 = vadd.f32 0.0, %v1095
    %v1097 = vpop.f32.mrb[0].mxu0
    %1098 = vmatprep.mubr.f32.mxu0 0.0
    %1099 = vmatmul.mubr.f32.gmra.mrb[0].mxu0 %v354
    %v1100 = vpop.f32.mrb[0].mxu0
    %v1101 = vadd.f32 0.0, %v1100
    %v1102 = vpop.f32.mrb[0].mxu0
    %1103 = vmatprep.mubr.f32.mxu0 0.0
    %1104 = vmatmul.mubr.f32.gmra.mrb[0].mxu0 %v355
    %v1105 = vpop.f32.mrb[0].mxu0
    %v1106 = vadd.f32 0.0, %v1105
    %v1107 = vpop.f32.mrb[0].mxu0
    %1108 = vmatprep.mubr.f32.mxu0 0.0
    %1109 = vmatmul.mubr.f32.gmra.mrb[0].mxu0 %v356
    %v1110 = vpop.f32.mrb[0].mxu0
    %v1111 = vadd.f32 0.0, %v1110
    %v1112 = vpop.f32.mrb[0].mxu0
    %1113 = vmatprep.mubr.f32.mxu0 0.0
    %1114 = vmatmul.mubr.f32.gmra.mrb[0].mxu0 %v357
    %v1115 = vpop.f32.mrb[0].mxu0
    %v1116 = vadd.f32 0.0, %v1115
    %v1117 = vpop.f32.mrb[0].mxu0
    %1118 = vmatprep.mubr.f32.mxu0 0.0
    %1119 = vmatmul.mubr.f32.gmra.mrb[0].mxu0 %v358
    %v1120 = vpop.f32.mrb[0].mxu0
    %v1121 = vadd.f32 0.0, %v1120
    %v1122 = vpop.f32.mrb[0].mxu0
    %1123 = vmatprep.mubr.f32.mxu0 0.0
    %1124 = vmatmul.mubr.f32.gmra.mrb[0].mxu0 %v359
    %v1125 = vpop.f32.mrb[0].mxu0
    %v1126 = vadd.f32 0.0, %v1125
    %v1127 = vpop.f32.mrb[0].mxu0
    %1128 = vmatprep.mubr.f32.mxu0 0.0
    %1129 = vmatmul.mubr.f32.gmra.mrb[0].mxu0 %v360
    %v1130 = vpop.f32.mrb[0].mxu0
    %v1131 = vadd.f32 0.0, %v1130
    %v1132 = vpop.f32.mrb[0].mxu0
    %1133 = vmatprep.mubr.f32.mxu0 0.0
    %1134 = vmatmul.mubr.f32.gmra.mrb[0].mxu0 %v361
    %v1135 = vpop.f32.mrb[0].mxu0
    %v1136 = vadd.f32 0.0, %v1135
    %v1137 = vpop.f32.mrb[0].mxu0
    %1138 = vmatprep.mubr.f32.mxu0 0.0
    %1139 = vmatmul.mubr.f32.gmra.mrb[0].mxu0 %v362
    %v1140 = vpop.f32.mrb[0].mxu0
    %v1141 = vadd.f32 0.0, %v1140
    %v1142 = vpop.f32.mrb[0].mxu0
    %1143 = vmatprep.mubr.f32.mxu0 0.0
    %1144 = vmatmul.mubr.f32.gmra.mrb[0].mxu0 %v363
    %v1145 = vpop.f32.mrb[0].mxu0
    %v1146 = vadd.f32 0.0, %v1145
    %v1147 = vpop.f32.mrb[0].mxu0
    %1148 = vmatprep.mubr.f32.mxu0 0.0
    %1149 = vmatmul.mubr.f32.gmra.mrb[0].mxu0 %v364
    %v1150 = vpop.f32.mrb[0].mxu0
    %v1151 = vadd.f32 0.0, %v1150
    %v1152 = vpop.f32.mrb[0].mxu0
    %1153 = vmatprep.mubr.f32.mxu0 0.0
    %1154 = vmatmul.mubr.f32.gmra.mrb[0].mxu0 %v365
    %v1155 = vpop.f32.mrb[0].mxu0
    %v1156 = vadd.f32 0.0, %v1155
    %v1157 = vpop.f32.mrb[0].mxu0
    %1158 = vmatprep.mubr.f32.mxu0 0.0
    %1159 = vmatmul.mubr.f32.gmra.mrb[0].mxu0 %v366
    %v1160 = vpop.f32.mrb[0].mxu0
    %v1161 = vadd.f32 0.0, %v1160
    %v1162 = vpop.f32.mrb[0].mxu0
    %1163 = vmatprep.mubr.f32.mxu0 0.0
    %1164 = vmatmul.mubr.f32.gmra.mrb[0].mxu0 %v367
    %v1165 = vpop.f32.mrb[0].mxu0
    %v1166 = vadd.f32 0.0, %v1165
    %v1167 = vpop.f32.mrb[0].mxu0
    %1168 = vmatprep.mubr.f32.mxu0 0.0
    %1169 = vmatmul.mubr.f32.gmra.mrb[0].mxu0 %v368
    %v1170 = vpop.f32.mrb[0].mxu0
    %v1171 = vadd.f32 0.0, %v1170
    %v1172 = vpop.f32.mrb[0].mxu0
    %1173 = vmatprep.mubr.f32.mxu0 0.0
    %1174 = vmatmul.mubr.f32.gmra.mrb[0].mxu0 %v369
    %v1175 = vpop.f32.mrb[0].mxu0
    %v1176 = vadd.f32 0.0, %v1175
    %v1177 = vpop.f32.mrb[0].mxu0
    %1178 = vmatprep.mubr.f32.mxu0 0.0
    %1179 = vmatmul.mubr.f32.gmra.mrb[0].mxu0 %v370
    %v1180 = vpop.f32.mrb[0].mxu0
    %v1181 = vadd.f32 0.0, %v1180
    %v1182 = vpop.f32.mrb[0].mxu0
    %1183 = vmatprep.mubr.f32.mxu0 0.0
    %1184 = vmatmul.mubr.f32.gmra.mrb[0].mxu0 %v371
    %v1185 = vpop.f32.mrb[0].mxu0
    %v1186 = vadd.f32 0.0, %v1185
    %v1187 = vpop.f32.mrb[0].mxu0
    %1188 = vmatprep.mubr.f32.mxu0 0.0
    %1189 = vmatmul.mubr.f32.gmra.mrb[0].mxu0 %v372
    %v1190 = vpop.f32.mrb[0].mxu0
    %v1191 = vadd.f32 0.0, %v1190
    %v1192 = vpop.f32.mrb[0].mxu0
    %1193 = vmatprep.mubr.f32.mxu0 0.0
    %1194 = vmatmul.mubr.f32.gmra.mrb[0].mxu0 %v373
    %v1195 = vpop.f32.mrb[0].mxu0
    %v1196 = vadd.f32 0.0, %v1195
    %v1197 = vpop.f32.mrb[0].mxu0
    %1198 = vdwg.mxu0
    %v1199 = vxor.u32 %v881, 2147483648
    %v1200 = vxor.u32 %v886, 2147483648
    %v1201 = vxor.u32 %v891, 2147483648
    %v1202 = vxor.u32 %v896, 2147483648
    %v1203 = vxor.u32 %v901, 2147483648
    %v1204 = vxor.u32 %v906, 2147483648
    %v1205 = vxor.u32 %v911, 2147483648
    %v1206 = vxor.u32 %v916, 2147483648
    %v1207 = vxor.u32 %v921, 2147483648
    %v1208 = vxor.u32 %v926, 2147483648
    %v1209 = vxor.u32 %v931, 2147483648
    %v1210 = vxor.u32 %v936, 2147483648
    %v1211 = vxor.u32 %v941, 2147483648
    %v1212 = vxor.u32 %v946, 2147483648
    %v1213 = vxor.u32 %v951, 2147483648
    %v1214 = vxor.u32 %v956, 2147483648
    %v1215 = vxor.u32 %v961, 2147483648
    %v1216 = vxor.u32 %v966, 2147483648
    %v1217 = vxor.u32 %v971, 2147483648
    %v1218 = vxor.u32 %v976, 2147483648
    %v1219 = vxor.u32 %v981, 2147483648
    %v1220 = vxor.u32 %v986, 2147483648
    %v1221 = vxor.u32 %v991, 2147483648
    %v1222 = vxor.u32 %v996, 2147483648
    %v1223 = vxor.u32 %v1001, 2147483648
    %v1224 = vxor.u32 %v1006, 2147483648
    %v1225 = vxor.u32 %v1011, 2147483648
    %v1226 = vxor.u32 %v1016, 2147483648
    %v1227 = vxor.u32 %v1021, 2147483648
    %v1228 = vxor.u32 %v1026, 2147483648
    %v1229 = vxor.u32 %v1031, 2147483648
    %v1230 = vxor.u32 %v1036, 2147483648
    %v1231 = vxor.u32 %v1041, 2147483648
    %v1232 = vxor.u32 %v1046, 2147483648
    %v1233 = vxor.u32 %v1051, 2147483648
    %v1234 = vxor.u32 %v1056, 2147483648
    %v1235 = vxor.u32 %v1061, 2147483648
    %v1236 = vxor.u32 %v1066, 2147483648
    %v1237 = vxor.u32 %v1071, 2147483648
    %v1238 = vxor.u32 %v1076, 2147483648
    %v1239 = vxor.u32 %v1081, 2147483648
    %v1240 = vxor.u32 %v1086, 2147483648
    %v1241 = vxor.u32 %v1091, 2147483648
    %v1242 = vxor.u32 %v1096, 2147483648
    %v1243 = vxor.u32 %v1101, 2147483648
    %v1244 = vxor.u32 %v1106, 2147483648
    %v1245 = vxor.u32 %v1111, 2147483648
    %v1246 = vxor.u32 %v1116, 2147483648
    %v1247 = vxor.u32 %v1121, 2147483648
    %v1248 = vxor.u32 %v1126, 2147483648
    %v1249 = vxor.u32 %v1131, 2147483648
    %v1250 = vxor.u32 %v1136, 2147483648
    %v1251 = vxor.u32 %v1141, 2147483648
    %v1252 = vxor.u32 %v1146, 2147483648
    %v1253 = vxor.u32 %v1151, 2147483648
    %v1254 = vxor.u32 %v1156, 2147483648
    %v1255 = vxor.u32 %v1161, 2147483648
    %v1256 = vxor.u32 %v1166, 2147483648
    %v1257 = vxor.u32 %v1171, 2147483648
    %v1258 = vxor.u32 %v1176, 2147483648
    %v1259 = vxor.u32 %v1181, 2147483648
    %v1260 = vxor.u32 %v1186, 2147483648
    %v1261 = vxor.u32 %v1191, 2147483648
    %v1262 = vxor.u32 %v1196, 2147483648
    %v1263 = vmul.f32 %v1199, 1.442695
    %v1264 = vpow.pop %v1263
    %v1265 = vmul.f32 %v1200, 1.442695
    %v1266 = vpow.pop %v1265
    %v1267 = vmul.f32 %v1201, 1.442695
    %v1268 = vpow.pop %v1267
    %v1269 = vmul.f32 %v1202, 1.442695
    %v1270 = vpow.pop %v1269
    %v1271 = vmul.f32 %v1203, 1.442695
    %v1272 = vpow.pop %v1271
    %v1273 = vmul.f32 %v1204, 1.442695
    %v1274 = vpow.pop %v1273
    %v1275 = vmul.f32 %v1205, 1.442695
    %v1276 = vpow.pop %v1275
    %v1277 = vmul.f32 %v1206, 1.442695
    %v1278 = vpow.pop %v1277
    %v1279 = vmul.f32 %v1207, 1.442695
    %v1280 = vpow.pop %v1279
    %v1281 = vmul.f32 %v1208, 1.442695
    %v1282 = vpow.pop %v1281
    %v1283 = vmul.f32 %v1209, 1.442695
    %v1284 = vpow.pop %v1283
    %v1285 = vmul.f32 %v1210, 1.442695
    %v1286 = vpow.pop %v1285
    %v1287 = vmul.f32 %v1211, 1.442695
    %v1288 = vpow.pop %v1287
    %v1289 = vmul.f32 %v1212, 1.442695
    %v1290 = vpow.pop %v1289
    %v1291 = vmul.f32 %v1213, 1.442695
    %v1292 = vpow.pop %v1291
    %v1293 = vmul.f32 %v1214, 1.442695
    %v1294 = vpow.pop %v1293
    %v1295 = vmul.f32 %v1215, 1.442695
    %v1296 = vpow.pop %v1295
    %v1297 = vmul.f32 %v1216, 1.442695
    %v1298 = vpow.pop %v1297
    %v1299 = vmul.f32 %v1217, 1.442695
    %v1300 = vpow.pop %v1299
    %v1301 = vmul.f32 %v1218, 1.442695
    %v1302 = vpow.pop %v1301
    %v1303 = vmul.f32 %v1219, 1.442695
    %v1304 = vpow.pop %v1303
    %v1305 = vmul.f32 %v1220, 1.442695
    %v1306 = vpow.pop %v1305
    %v1307 = vmul.f32 %v1221, 1.442695
    %v1308 = vpow.pop %v1307
    %v1309 = vmul.f32 %v1222, 1.442695
    %v1310 = vpow.pop %v1309
    %v1311 = vmul.f32 %v1223, 1.442695
    %v1312 = vpow.pop %v1311
    %v1313 = vmul.f32 %v1224, 1.442695
    %v1314 = vpow.pop %v1313
    %v1315 = vmul.f32 %v1225, 1.442695
    %v1316 = vpow.pop %v1315
    %v1317 = vmul.f32 %v1226, 1.442695
    %v1318 = vpow.pop %v1317
    %v1319 = vmul.f32 %v1227, 1.442695
    %v1320 = vpow.pop %v1319
    %v1321 = vmul.f32 %v1228, 1.442695
    %v1322 = vpow.pop %v1321
    %v1323 = vmul.f32 %v1229, 1.442695
    %v1324 = vpow.pop %v1323
    %v1325 = vmul.f32 %v1230, 1.442695
    %v1326 = vpow.pop %v1325
    %v1327 = vmul.f32 %v1231, 1.442695
    %v1328 = vpow.pop %v1327
    %v1329 = vmul.f32 %v1232, 1.442695
    %v1330 = vpow.pop %v1329
    %v1331 = vmul.f32 %v1233, 1.442695
    %v1332 = vpow.pop %v1331
    %v1333 = vmul.f32 %v1234, 1.442695
    %v1334 = vpow.pop %v1333
    %v1335 = vmul.f32 %v1235, 1.442695
    %v1336 = vpow.pop %v1335
    %v1337 = vmul.f32 %v1236, 1.442695
    %v1338 = vpow.pop %v1337
    %v1339 = vmul.f32 %v1237, 1.442695
    %v1340 = vpow.pop %v1339
    %v1341 = vmul.f32 %v1238, 1.442695
    %v1342 = vpow.pop %v1341
    %v1343 = vmul.f32 %v1239, 1.442695
    %v1344 = vpow.pop %v1343
    %v1345 = vmul.f32 %v1240, 1.442695
    %v1346 = vpow.pop %v1345
    %v1347 = vmul.f32 %v1241, 1.442695
    %v1348 = vpow.pop %v1347
    %v1349 = vmul.f32 %v1242, 1.442695
    %v1350 = vpow.pop %v1349
    %v1351 = vmul.f32 %v1243, 1.442695
    %v1352 = vpow.pop %v1351
    %v1353 = vmul.f32 %v1244, 1.442695
    %v1354 = vpow.pop %v1353
    %v1355 = vmul.f32 %v1245, 1.442695
    %v1356 = vpow.pop %v1355
    %v1357 = vmul.f32 %v1246, 1.442695
    %v1358 = vpow.pop %v1357
    %v1359 = vmul.f32 %v1247, 1.442695
    %v1360 = vpow.pop %v1359
    %v1361 = vmul.f32 %v1248, 1.442695
    %v1362 = vpow.pop %v1361
    %v1363 = vmul.f32 %v1249, 1.442695
    %v1364 = vpow.pop %v1363
    %v1365 = vmul.f32 %v1250, 1.442695
    %v1366 = vpow.pop %v1365
    %v1367 = vmul.f32 %v1251, 1.442695
    %v1368 = vpow.pop %v1367
    %v1369 = vmul.f32 %v1252, 1.442695
    %v1370 = vpow.pop %v1369
    %v1371 = vmul.f32 %v1253, 1.442695
    %v1372 = vpow.pop %v1371
    %v1373 = vmul.f32 %v1254, 1.442695
    %v1374 = vpow.pop %v1373
    %v1375 = vmul.f32 %v1255, 1.442695
    %v1376 = vpow.pop %v1375
    %v1377 = vmul.f32 %v1256, 1.442695
    %v1378 = vpow.pop %v1377
    %v1379 = vmul.f32 %v1257, 1.442695
    %v1380 = vpow.pop %v1379
    %v1381 = vmul.f32 %v1258, 1.442695
    %v1382 = vpow.pop %v1381
    %v1383 = vmul.f32 %v1259, 1.442695
    %v1384 = vpow.pop %v1383
    %v1385 = vmul.f32 %v1260, 1.442695
    %v1386 = vpow.pop %v1385
    %v1387 = vmul.f32 %v1261, 1.442695
    %v1388 = vpow.pop %v1387
    %v1389 = vmul.f32 %v1262, 1.442695
    %v1390 = vpow.pop %v1389
    %v1391 = vadd.f32 %v1264, 1.0
    %v1392 = vadd.f32 %v1266, 1.0
    %v1393 = vadd.f32 %v1268, 1.0
    %v1394 = vadd.f32 %v1270, 1.0
    %v1395 = vadd.f32 %v1272, 1.0
    %v1396 = vadd.f32 %v1274, 1.0
    %v1397 = vadd.f32 %v1276, 1.0
    %v1398 = vadd.f32 %v1278, 1.0
    %v1399 = vadd.f32 %v1280, 1.0
    %v1400 = vadd.f32 %v1282, 1.0
    %v1401 = vadd.f32 %v1284, 1.0
    %v1402 = vadd.f32 %v1286, 1.0
    %v1403 = vadd.f32 %v1288, 1.0
    %v1404 = vadd.f32 %v1290, 1.0
    %v1405 = vadd.f32 %v1292, 1.0
    %v1406 = vadd.f32 %v1294, 1.0
    %v1407 = vadd.f32 %v1296, 1.0
    %v1408 = vadd.f32 %v1298, 1.0
    %v1409 = vadd.f32 %v1300, 1.0
    %v1410 = vadd.f32 %v1302, 1.0
    %v1411 = vadd.f32 %v1304, 1.0
    %v1412 = vadd.f32 %v1306, 1.0
    %v1413 = vadd.f32 %v1308, 1.0
    %v1414 = vadd.f32 %v1310, 1.0
    %v1415 = vadd.f32 %v1312, 1.0
    %v1416 = vadd.f32 %v1314, 1.0
    %v1417 = vadd.f32 %v1316, 1.0
    %v1418 = vadd.f32 %v1318, 1.0
    %v1419 = vadd.f32 %v1320, 1.0
    %v1420 = vadd.f32 %v1322, 1.0
    %v1421 = vadd.f32 %v1324, 1.0
    %v1422 = vadd.f32 %v1326, 1.0
    %v1423 = vadd.f32 %v1328, 1.0
    %v1424 = vadd.f32 %v1330, 1.0
    %v1425 = vadd.f32 %v1332, 1.0
    %v1426 = vadd.f32 %v1334, 1.0
    %v1427 = vadd.f32 %v1336, 1.0
    %v1428 = vadd.f32 %v1338, 1.0
    %v1429 = vadd.f32 %v1340, 1.0
    %v1430 = vadd.f32 %v1342, 1.0
    %v1431 = vadd.f32 %v1344, 1.0
    %v1432 = vadd.f32 %v1346, 1.0
    %v1433 = vadd.f32 %v1348, 1.0
    %v1434 = vadd.f32 %v1350, 1.0
    %v1435 = vadd.f32 %v1352, 1.0
    %v1436 = vadd.f32 %v1354, 1.0
    %v1437 = vadd.f32 %v1356, 1.0
    %v1438 = vadd.f32 %v1358, 1.0
    %v1439 = vadd.f32 %v1360, 1.0
    %v1440 = vadd.f32 %v1362, 1.0
    %v1441 = vadd.f32 %v1364, 1.0
    %v1442 = vadd.f32 %v1366, 1.0
    %v1443 = vadd.f32 %v1368, 1.0
    %v1444 = vadd.f32 %v1370, 1.0
    %v1445 = vadd.f32 %v1372, 1.0
    %v1446 = vadd.f32 %v1374, 1.0
    %v1447 = vadd.f32 %v1376, 1.0
    %v1448 = vadd.f32 %v1378, 1.0
    %v1449 = vadd.f32 %v1380, 1.0
    %v1450 = vadd.f32 %v1382, 1.0
    %v1451 = vadd.f32 %v1384, 1.0
    %v1452 = vadd.f32 %v1386, 1.0
    %v1453 = vadd.f32 %v1388, 1.0
    %v1454 = vadd.f32 %v1390, 1.0
    %v1455 = vrcp.pop %v1391
    %v1456 = vmul.f32 1.0, %v1455
    %v1457 = vrcp.pop %v1392
    %v1458 = vmul.f32 1.0, %v1457
    %v1459 = vrcp.pop %v1393
    %v1460 = vmul.f32 1.0, %v1459
    %v1461 = vrcp.pop %v1394
    %v1462 = vmul.f32 1.0, %v1461
    %v1463 = vrcp.pop %v1395
    %v1464 = vmul.f32 1.0, %v1463
    %v1465 = vrcp.pop %v1396
    %v1466 = vmul.f32 1.0, %v1465
    %v1467 = vrcp.pop %v1397
    %v1468 = vmul.f32 1.0, %v1467
    %v1469 = vrcp.pop %v1398
    %v1470 = vmul.f32 1.0, %v1469
    %v1471 = vrcp.pop %v1399
    %v1472 = vmul.f32 1.0, %v1471
    %v1473 = vrcp.pop %v1400
    %v1474 = vmul.f32 1.0, %v1473
    %v1475 = vrcp.pop %v1401
    %v1476 = vmul.f32 1.0, %v1475
    %v1477 = vrcp.pop %v1402
    %v1478 = vmul.f32 1.0, %v1477
    %v1479 = vrcp.pop %v1403
    %v1480 = vmul.f32 1.0, %v1479
    %v1481 = vrcp.pop %v1404
    %v1482 = vmul.f32 1.0, %v1481
    %v1483 = vrcp.pop %v1405
    %v1484 = vmul.f32 1.0, %v1483
    %v1485 = vrcp.pop %v1406
    %v1486 = vmul.f32 1.0, %v1485
    %v1487 = vrcp.pop %v1407
    %v1488 = vmul.f32 1.0, %v1487
    %v1489 = vrcp.pop %v1408
    %v1490 = vmul.f32 1.0, %v1489
    %v1491 = vrcp.pop %v1409
    %v1492 = vmul.f32 1.0, %v1491
    %v1493 = vrcp.pop %v1410
    %v1494 = vmul.f32 1.0, %v1493
    %v1495 = vrcp.pop %v1411
    %v1496 = vmul.f32 1.0, %v1495
    %v1497 = vrcp.pop %v1412
    %v1498 = vmul.f32 1.0, %v1497
    %v1499 = vrcp.pop %v1413
    %v1500 = vmul.f32 1.0, %v1499
    %v1501 = vrcp.pop %v1414
    %v1502 = vmul.f32 1.0, %v1501
    %v1503 = vrcp.pop %v1415
    %v1504 = vmul.f32 1.0, %v1503
    %v1505 = vrcp.pop %v1416
    %v1506 = vmul.f32 1.0, %v1505
    %v1507 = vrcp.pop %v1417
    %v1508 = vmul.f32 1.0, %v1507
    %v1509 = vrcp.pop %v1418
    %v1510 = vmul.f32 1.0, %v1509
    %v1511 = vrcp.pop %v1419
    %v1512 = vmul.f32 1.0, %v1511
    %v1513 = vrcp.pop %v1420
    %v1514 = vmul.f32 1.0, %v1513
    %v1515 = vrcp.pop %v1421
    %v1516 = vmul.f32 1.0, %v1515
    %v1517 = vrcp.pop %v1422
    %v1518 = vmul.f32 1.0, %v1517
    %v1519 = vrcp.pop %v1423
    %v1520 = vmul.f32 1.0, %v1519
    %v1521 = vrcp.pop %v1424
    %v1522 = vmul.f32 1.0, %v1521
    %v1523 = vrcp.pop %v1425
    %v1524 = vmul.f32 1.0, %v1523
    %v1525 = vrcp.pop %v1426
    %v1526 = vmul.f32 1.0, %v1525
    %v1527 = vrcp.pop %v1427
    %v1528 = vmul.f32 1.0, %v1527
    %v1529 = vrcp.pop %v1428
    %v1530 = vmul.f32 1.0, %v1529
    %v1531 = vrcp.pop %v1429
    %v1532 = vmul.f32 1.0, %v1531
    %v1533 = vrcp.pop %v1430
    %v1534 = vmul.f32 1.0, %v1533
    %v1535 = vrcp.pop %v1431
    %v1536 = vmul.f32 1.0, %v1535
    %v1537 = vrcp.pop %v1432
    %v1538 = vmul.f32 1.0, %v1537
    %v1539 = vrcp.pop %v1433
    %v1540 = vmul.f32 1.0, %v1539
    %v1541 = vrcp.pop %v1434
    %v1542 = vmul.f32 1.0, %v1541
    %v1543 = vrcp.pop %v1435
    %v1544 = vmul.f32 1.0, %v1543
    %v1545 = vrcp.pop %v1436
    %v1546 = vmul.f32 1.0, %v1545
    %v1547 = vrcp.pop %v1437
    %v1548 = vmul.f32 1.0, %v1547
    %v1549 = vrcp.pop %v1438
    %v1550 = vmul.f32 1.0, %v1549
    %v1551 = vrcp.pop %v1439
    %v1552 = vmul.f32 1.0, %v1551
    %v1553 = vrcp.pop %v1440
    %v1554 = vmul.f32 1.0, %v1553
    %v1555 = vrcp.pop %v1441
    %v1556 = vmul.f32 1.0, %v1555
    %v1557 = vrcp.pop %v1442
    %v1558 = vmul.f32 1.0, %v1557
    %v1559 = vrcp.pop %v1443
    %v1560 = vmul.f32 1.0, %v1559
    %v1561 = vrcp.pop %v1444
    %v1562 = vmul.f32 1.0, %v1561
    %v1563 = vrcp.pop %v1445
    %v1564 = vmul.f32 1.0, %v1563
    %v1565 = vrcp.pop %v1446
    %v1566 = vmul.f32 1.0, %v1565
    %v1567 = vrcp.pop %v1447
    %v1568 = vmul.f32 1.0, %v1567
    %v1569 = vrcp.pop %v1448
    %v1570 = vmul.f32 1.0, %v1569
    %v1571 = vrcp.pop %v1449
    %v1572 = vmul.f32 1.0, %v1571
    %v1573 = vrcp.pop %v1450
    %v1574 = vmul.f32 1.0, %v1573
    %v1575 = vrcp.pop %v1451
    %v1576 = vmul.f32 1.0, %v1575
    %v1577 = vrcp.pop %v1452
    %v1578 = vmul.f32 1.0, %v1577
    %v1579 = vrcp.pop %v1453
    %v1580 = vmul.f32 1.0, %v1579
    %v1581 = vrcp.pop %v1454
    %v1582 = vmul.f32 1.0, %v1581
    %v1583 = vld [vmem:[%s5] sm:$0x3]
    %1584 = vmatprep.subr.mxu0 0.0
    %1585 = vmatpush1.msra.mxu0 %v294
    %1586 = vmatprep.subr.mxu0 0.0
    %1587 = vmatpush1.msra.mxu0 %v295
    %1588 = vmatprep.subr.mxu0 0.0
    %1589 = vmatpush1.msra.mxu0 %v296
    %1590 = vmatprep.subr.mxu0 0.0
    %1591 = vmatpush1.msra.mxu0 %v297
    %1592 = vmatprep.subr.mxu0 0.0
    %1593 = vmatpush1.msra.mxu0 %v298
    %1594 = vmatprep.subr.mxu0 0.0
    %1595 = vmatpush1.msra.mxu0 %v299
    %1596 = vmatprep.subr.mxu0 0.0
    %1597 = vmatpush1.msra.mxu0 %v300
    %1598 = vmatprep.subr.mxu0 0.0
    %1599 = vmatpush1.msra.mxu0 %v301
    %1600 = vmatprep.subr.mxu0 0.0
    %1601 = vmatpush1.msra.mxu0 %v302
    %1602 = vmatprep.subr.mxu0 0.0
    %1603 = vmatpush1.msra.mxu0 %v303
    %1604 = vmatprep.subr.mxu0 0.0
    %1605 = vmatpush1.msra.mxu0 %v304
    %1606 = vmatprep.subr.mxu0 0.0
    %1607 = vmatpush1.msra.mxu0 %v305
    %1608 = vmatprep.subr.mxu0 0.0
    %1609 = vmatpush1.msra.mxu0 %v306
    %1610 = vmatprep.subr.mxu0 0.0
    %1611 = vmatpush1.msra.mxu0 %v307
    %1612 = vmatprep.subr.mxu0 0.0
    %1613 = vmatpush1.msra.mxu0 %v308
    %1614 = vmatprep.subr.mxu0 0.0
    %1615 = vmatpush1.msra.mxu0 %v309
    %1616 = vmatprep.subr.mxu0 0.0
    %1617 = vmatpush1.msra.mxu0 0.0
    %1618 = vmatprep.subr.mxu0 0.0
    %1619 = vmatpush1.msra.mxu0 0.0
    %1620 = vmatprep.subr.mxu0 0.0
    %1621 = vmatpush1.msra.mxu0 0.0
    %1622 = vmatprep.subr.mxu0 0.0
    %1623 = vmatpush1.msra.mxu0 0.0
    %1624 = vmatprep.subr.mxu0 0.0
    %1625 = vmatpush1.msra.mxu0 0.0
    %1626 = vmatprep.subr.mxu0 0.0
    %1627 = vmatpush1.msra.mxu0 0.0
    %1628 = vmatprep.subr.mxu0 0.0
    %1629 = vmatpush1.msra.mxu0 0.0
    %1630 = vmatprep.subr.mxu0 0.0
    %1631 = vmatpush1.msra.mxu0 0.0
    %1632 = vmatprep.subr.mxu0 0.0
    %1633 = vmatpush1.msra.mxu0 0.0
    %1634 = vmatprep.subr.mxu0 0.0
    %1635 = vmatpush1.msra.mxu0 0.0
    %1636 = vmatprep.subr.mxu0 0.0
    %1637 = vmatpush1.msra.mxu0 0.0
    %1638 = vmatprep.subr.mxu0 0.0
    %1639 = vmatpush1.msra.mxu0 0.0
    %1640 = vmatprep.subr.mxu0 0.0
    %1641 = vmatpush1.msra.mxu0 0.0
    %1642 = vmatprep.subr.mxu0 0.0
    %1643 = vmatpush1.msra.mxu0 0.0
    %1644 = vmatprep.subr.mxu0 0.0
    %1645 = vmatpush1.msra.mxu0 0.0
    %1646 = vmatprep.subr.mxu0 0.0
    %1647 = vmatpush1.msra.mxu0 0.0
    %1648 = vmatprep.mubr.f32.mxu0 0.0
    %1649 = vmatmul.mubr.f32.gmra.mrb[0].mxu0 %v1583
    %v1650 = vpop.f32.mrb[0].mxu0
    %v1651 = vadd.f32 0.0, %v1650
    %v1652 = vpop.f32.mrb[0].mxu0
    %1653 = vdwg.mxu0
    %v1654 = vld [vmem:[%s7] sm:$0xff]
    %v1655 = vld [vmem:[%s7 + $0x8] sm:$0xff]
    %v1656 = vld [vmem:[%s7 + $0x10] sm:$0xff]
    %v1657 = vld [vmem:[%s7 + $0x18] sm:$0xff]
    %v1658 = vld [vmem:[%s7 + $0x20] sm:$0xff]
    %v1659 = vld [vmem:[%s7 + $0x28] sm:$0xff]
    %v1660 = vld [vmem:[%s7 + $0x30] sm:$0xff]
    %v1661 = vld [vmem:[%s7 + $0x38] sm:$0xff]
    %v1662 = vld [vmem:[%s7 + $0x40] sm:$0xff]
    %v1663 = vld [vmem:[%s7 + $0x48] sm:$0xff]
    %v1664 = vld [vmem:[%s7 + $0x50] sm:$0xff]
    %v1665 = vld [vmem:[%s7 + $0x58] sm:$0xff]
    %v1666 = vld [vmem:[%s7 + $0x60] sm:$0xff]
    %v1667 = vld [vmem:[%s7 + $0x68] sm:$0xff]
    %v1668 = vld [vmem:[%s7 + $0x70] sm:$0xff]
    %v1669 = vld [vmem:[%s7 + $0x78] sm:$0xff]
    %v1670 = vld [vmem:[%s8] sm:$0x1]
    %v1672 = vlaneseq
    %v1673 = vshrl.u32 %v1672, 7
    %v1674 = vsub.s32 0, %v1673
    %v1675 = vrot.slane %v1670, %v1674
    %1677 = vmatprep.subr.mxu0 0.0
    %1678 = vmatpush1.msra.mxu0 %v1654
    %1679 = vmatprep.subr.mxu0 0.0
    %1680 = vmatpush1.msra.mxu0 %v1655
    %1681 = vmatprep.subr.mxu0 0.0
    %1682 = vmatpush1.msra.mxu0 %v1656
    %1683 = vmatprep.subr.mxu0 0.0
    %1684 = vmatpush1.msra.mxu0 %v1657
    %1685 = vmatprep.subr.mxu0 0.0
    %1686 = vmatpush1.msra.mxu0 %v1658
    %1687 = vmatprep.subr.mxu0 0.0
    %1688 = vmatpush1.msra.mxu0 %v1659
    %1689 = vmatprep.subr.mxu0 0.0
    %1690 = vmatpush1.msra.mxu0 %v1660
    %1691 = vmatprep.subr.mxu0 0.0
    %1692 = vmatpush1.msra.mxu0 %v1661
    %1693 = vmatprep.subr.mxu0 0.0
    %1694 = vmatpush1.msra.mxu0 %v1662
    %1695 = vmatprep.subr.mxu0 0.0
    %1696 = vmatpush1.msra.mxu0 %v1663
    %1697 = vmatprep.subr.mxu0 0.0
    %1698 = vmatpush1.msra.mxu0 %v1664
    %1699 = vmatprep.subr.mxu0 0.0
    %1700 = vmatpush1.msra.mxu0 %v1665
    %1701 = vmatprep.subr.mxu0 0.0
    %1702 = vmatpush1.msra.mxu0 %v1666
    %1703 = vmatprep.subr.mxu0 0.0
    %1704 = vmatpush1.msra.mxu0 %v1667
    %1705 = vmatprep.subr.mxu0 0.0
    %1706 = vmatpush1.msra.mxu0 %v1668
    %1707 = vmatprep.subr.mxu0 0.0
    %1708 = vmatpush1.msra.mxu0 %v1669
    %1709 = vmatprep.subr.mxu0 0.0
    %1710 = vmatpush1.msra.mxu0 0.0
    %1711 = vmatprep.subr.mxu0 0.0
    %1712 = vmatpush1.msra.mxu0 0.0
    %1713 = vmatprep.subr.mxu0 0.0
    %1714 = vmatpush1.msra.mxu0 0.0
    %1715 = vmatprep.subr.mxu0 0.0
    %1716 = vmatpush1.msra.mxu0 0.0
    %1717 = vmatprep.subr.mxu0 0.0
    %1718 = vmatpush1.msra.mxu0 0.0
    %1719 = vmatprep.subr.mxu0 0.0
    %1720 = vmatpush1.msra.mxu0 0.0
    %1721 = vmatprep.subr.mxu0 0.0
    %1722 = vmatpush1.msra.mxu0 0.0
    %1723 = vmatprep.subr.mxu0 0.0
    %1724 = vmatpush1.msra.mxu0 0.0
    %1725 = vmatprep.subr.mxu0 0.0
    %1726 = vmatpush1.msra.mxu0 0.0
    %1727 = vmatprep.subr.mxu0 0.0
    %1728 = vmatpush1.msra.mxu0 0.0
    %1729 = vmatprep.subr.mxu0 0.0
    %1730 = vmatpush1.msra.mxu0 0.0
    %1731 = vmatprep.subr.mxu0 0.0
    %1732 = vmatpush1.msra.mxu0 0.0
    %1733 = vmatprep.subr.mxu0 0.0
    %1734 = vmatpush1.msra.mxu0 0.0
    %1735 = vmatprep.subr.mxu0 0.0
    %1736 = vmatpush1.msra.mxu0 0.0
    %1737 = vmatprep.subr.mxu0 0.0
    %1738 = vmatpush1.msra.mxu0 0.0
    %1739 = vmatprep.subr.mxu0 0.0
    %1740 = vmatpush1.msra.mxu0 0.0
    %1741 = vmatprep.mubr.f32.mxu0 0.0
    %1742 = vmatmul.mubr.f32.gmra.mrb[0].mxu0 %v1651
    %v1743 = vpop.f32.mrb[0].mxu0
    %v1744 = vadd.f32 %v1675, %v1743
    %v1745 = vpop.f32.mrb[0].mxu0
    %1746 = vdwg.mxu0
    %v1747 = vmax.f32 %v1744, 0.0
    %v1748 = vld [vmem:[%s9] sm:$0x3]
    %v1749 = vld [vmem:[%s10] sm:$0x1]
    %v1751 = vlaneseq
    %v1752 = vshrl.u32 %v1751, 7
    %v1753 = vsub.s32 0, %v1752
    %v1754 = vrot.slane %v1749, %v1753
    %vm1756 = vcmask 15360
    %v1758 = vsel %vm1756, %v1747, 0
    %vm1760 = vcmask 1041408
    %v1762 = vsel %vm1760, %v1748, 0
    %1764 = vmatprep.subr.mxu0 0.0
    %1765 = vmatpush1.msra.mxu0 %v1762
    %1766 = vmatprep.subr.mxu0 0.0
    %1767 = vmatpush1.msra.mxu0 0.0
    %1768 = vmatprep.subr.mxu0 0.0
    %1769 = vmatpush1.msra.mxu0 0.0
    %1770 = vmatprep.subr.mxu0 0.0
    %1771 = vmatpush1.msra.mxu0 0.0
    %1772 = vmatprep.subr.mxu0 0.0
    %1773 = vmatpush1.msra.mxu0 0.0
    %1774 = vmatprep.subr.mxu0 0.0
    %1775 = vmatpush1.msra.mxu0 0.0
    %1776 = vmatprep.subr.mxu0 0.0
    %1777 = vmatpush1.msra.mxu0 0.0
    %1778 = vmatprep.subr.mxu0 0.0
    %1779 = vmatpush1.msra.mxu0 0.0
    %1780 = vmatprep.subr.mxu0 0.0
    %1781 = vmatpush1.msra.mxu0 0.0
    %1782 = vmatprep.subr.mxu0 0.0
    %1783 = vmatpush1.msra.mxu0 0.0
    %1784 = vmatprep.subr.mxu0 0.0
    %1785 = vmatpush1.msra.mxu0 0.0
    %1786 = vmatprep.subr.mxu0 0.0
    %1787 = vmatpush1.msra.mxu0 0.0
    %1788 = vmatprep.subr.mxu0 0.0
    %1789 = vmatpush1.msra.mxu0 0.0
    %1790 = vmatprep.subr.mxu0 0.0
    %1791 = vmatpush1.msra.mxu0 0.0
    %1792 = vmatprep.subr.mxu0 0.0
    %1793 = vmatpush1.msra.mxu0 0.0
    %1794 = vmatprep.subr.mxu0 0.0
    %1795 = vmatpush1.msra.mxu0 0.0
    %1796 = vmatprep.subr.mxu0 0.0
    %1797 = vmatpush1.msra.mxu0 0.0
    %1798 = vmatprep.subr.mxu0 0.0
    %1799 = vmatpush1.msra.mxu0 0.0
    %1800 = vmatprep.subr.mxu0 0.0
    %1801 = vmatpush1.msra.mxu0 0.0
    %1802 = vmatprep.subr.mxu0 0.0
    %1803 = vmatpush1.msra.mxu0 0.0
    %1804 = vmatprep.subr.mxu0 0.0
    %1805 = vmatpush1.msra.mxu0 0.0
    %1806 = vmatprep.subr.mxu0 0.0
    %1807 = vmatpush1.msra.mxu0 0.0
    %1808 = vmatprep.subr.mxu0 0.0
    %1809 = vmatpush1.msra.mxu0 0.0
    %1810 = vmatprep.subr.mxu0 0.0
    %1811 = vmatpush1.msra.mxu0 0.0
    %1812 = vmatprep.subr.mxu0 0.0
    %1813 = vmatpush1.msra.mxu0 0.0
    %1814 = vmatprep.subr.mxu0 0.0
    %1815 = vmatpush1.msra.mxu0 0.0
    %1816 = vmatprep.subr.mxu0 0.0
    %1817 = vmatpush1.msra.mxu0 0.0
    %1818 = vmatprep.subr.mxu0 0.0
    %1819 = vmatpush1.msra.mxu0 0.0
    %1820 = vmatprep.subr.mxu0 0.0
    %1821 = vmatpush1.msra.mxu0 0.0
    %1822 = vmatprep.subr.mxu0 0.0
    %1823 = vmatpush1.msra.mxu0 0.0
    %1824 = vmatprep.subr.mxu0 0.0
    %1825 = vmatpush1.msra.mxu0 0.0
    %1826 = vmatprep.subr.mxu0 0.0
    %1827 = vmatpush1.msra.mxu0 0.0
    %1828 = vmatprep.mubr.f32.mxu0 0.0
    %1829 = vmatmul.mubr.f32.gmra.mrb[0].mxu0 %v1758
    %v1830 = vpop.f32.mrb[0].mxu0
    %v1831 = vadd.f32 %v1754, %v1830
    %v1832 = vpop.f32.mrb[0].mxu0
    %1833 = vdwg.mxu0
    %v1834 = vxor.u32 %v1831, 2147483648
    %v1835 = vmul.f32 %v1834, 1.442695
    %v1836 = vpow.pop %v1835
    %v1837 = vadd.f32 %v1836, 1.0
    %v1838 = vrcp.pop %v1837
    %v1839 = vmul.f32 1.0, %v1838
    %v1842 = vunpack.c.l.s4 1966171168
    %v1843 = vunpack.c.0.s8 %v1842
    %v1844 = vlaneseq
    %v1845 = vshrl.u32 %v1844, 7
    %v1846 = vsub.s32 %v1843, %v1845
    %v1847 = vrot.slane %v1839, %v1846
    %v1848 = vcombine.high %v1847, %v1847
    %v1850 = vunpack.c.l.s4 1966171168
    %v1851 = vunpack.c.0.s8 %v1850
    %v1852 = vlaneseq
    %v1853 = vshrl.u32 %v1852, 7
    %v1854 = vsub.s32 %v1851, %v1853
    %v1855 = vrot.slane %v1847, %v1854
    %v1857 = vunpack.c.l.s4 1966171168
    %v1858 = vunpack.c.0.s8 %v1857
    %v1859 = vlaneseq
    %v1860 = vshrl.u32 %v1859, 7
    %v1861 = vsub.s32 %v1858, %v1860
    %v1862 = vrot.slane %v1848, %v1861
    %1864 = vset.pattern.permute.xlu0 0
    %1865 = vperm.xlu0 %1864, %v1456
    %v1866 = vpop.permute.xlu0 %1865
    %1869 = vset.pattern.permute.xlu0 0
    %1870 = vperm.xlu0 %1869, %v1458
    %v1871 = vpop.permute.xlu0 %1870
    %1874 = vset.pattern.permute.xlu0 0
    %1875 = vperm.xlu0 %1874, %v1460
    %v1876 = vpop.permute.xlu0 %1875
    %1879 = vset.pattern.permute.xlu0 0
    %1880 = vperm.xlu0 %1879, %v1462
    %v1881 = vpop.permute.xlu0 %1880
    %1884 = vset.pattern.permute.xlu0 0
    %1885 = vperm.xlu0 %1884, %v1464
    %v1886 = vpop.permute.xlu0 %1885
    %1889 = vset.pattern.permute.xlu0 0
    %1890 = vperm.xlu0 %1889, %v1466
    %v1891 = vpop.permute.xlu0 %1890
    %1894 = vset.pattern.permute.xlu0 0
    %1895 = vperm.xlu0 %1894, %v1468
    %v1896 = vpop.permute.xlu0 %1895
    %1899 = vset.pattern.permute.xlu0 0
    %1900 = vperm.xlu0 %1899, %v1470
    %v1901 = vpop.permute.xlu0 %1900
    %1904 = vset.pattern.permute.xlu0 0
    %1905 = vperm.xlu0 %1904, %v1472
    %v1906 = vpop.permute.xlu0 %1905
    %1909 = vset.pattern.permute.xlu0 0
    %1910 = vperm.xlu0 %1909, %v1474
    %v1911 = vpop.permute.xlu0 %1910
    %1914 = vset.pattern.permute.xlu0 0
    %1915 = vperm.xlu0 %1914, %v1476
    %v1916 = vpop.permute.xlu0 %1915
    %1919 = vset.pattern.permute.xlu0 0
    %1920 = vperm.xlu0 %1919, %v1478
    %v1921 = vpop.permute.xlu0 %1920
    %1924 = vset.pattern.permute.xlu0 0
    %1925 = vperm.xlu0 %1924, %v1480
    %v1926 = vpop.permute.xlu0 %1925
    %1929 = vset.pattern.permute.xlu0 0
    %1930 = vperm.xlu0 %1929, %v1482
    %v1931 = vpop.permute.xlu0 %1930
    %1934 = vset.pattern.permute.xlu0 0
    %1935 = vperm.xlu0 %1934, %v1484
    %v1936 = vpop.permute.xlu0 %1935
    %1939 = vset.pattern.permute.xlu0 0
    %1940 = vperm.xlu0 %1939, %v1486
    %v1941 = vpop.permute.xlu0 %1940
    %1944 = vset.pattern.permute.xlu0 0
    %1945 = vperm.xlu0 %1944, %v1488
    %v1946 = vpop.permute.xlu0 %1945
    %1949 = vset.pattern.permute.xlu0 0
    %1950 = vperm.xlu0 %1949, %v1490
    %v1951 = vpop.permute.xlu0 %1950
    %1954 = vset.pattern.permute.xlu0 0
    %1955 = vperm.xlu0 %1954, %v1492
    %v1956 = vpop.permute.xlu0 %1955
    %1959 = vset.pattern.permute.xlu0 0
    %1960 = vperm.xlu0 %1959, %v1494
    %v1961 = vpop.permute.xlu0 %1960
    %1964 = vset.pattern.permute.xlu0 0
    %1965 = vperm.xlu0 %1964, %v1496
    %v1966 = vpop.permute.xlu0 %1965
    %1969 = vset.pattern.permute.xlu0 0
    %1970 = vperm.xlu0 %1969, %v1498
    %v1971 = vpop.permute.xlu0 %1970
    %1974 = vset.pattern.permute.xlu0 0
    %1975 = vperm.xlu0 %1974, %v1500
    %v1976 = vpop.permute.xlu0 %1975
    %1979 = vset.pattern.permute.xlu0 0
    %1980 = vperm.xlu0 %1979, %v1502
    %v1981 = vpop.permute.xlu0 %1980
    %1984 = vset.pattern.permute.xlu0 0
    %1985 = vperm.xlu0 %1984, %v1504
    %v1986 = vpop.permute.xlu0 %1985
    %1989 = vset.pattern.permute.xlu0 0
    %1990 = vperm.xlu0 %1989, %v1506
    %v1991 = vpop.permute.xlu0 %1990
    %1994 = vset.pattern.permute.xlu0 0
    %1995 = vperm.xlu0 %1994, %v1508
    %v1996 = vpop.permute.xlu0 %1995
    %1999 = vset.pattern.permute.xlu0 0
    %2000 = vperm.xlu0 %1999, %v1510
    %v2001 = vpop.permute.xlu0 %2000
    %2004 = vset.pattern.permute.xlu0 0
    %2005 = vperm.xlu0 %2004, %v1512
    %v2006 = vpop.permute.xlu0 %2005
    %2009 = vset.pattern.permute.xlu0 0
    %2010 = vperm.xlu0 %2009, %v1514
    %v2011 = vpop.permute.xlu0 %2010
    %2014 = vset.pattern.permute.xlu0 0
    %2015 = vperm.xlu0 %2014, %v1516
    %v2016 = vpop.permute.xlu0 %2015
    %2019 = vset.pattern.permute.xlu0 0
    %2020 = vperm.xlu0 %2019, %v1518
    %v2021 = vpop.permute.xlu0 %2020
    %2024 = vset.pattern.permute.xlu0 0
    %2025 = vperm.xlu0 %2024, %v1520
    %v2026 = vpop.permute.xlu0 %2025
    %2029 = vset.pattern.permute.xlu0 0
    %2030 = vperm.xlu0 %2029, %v1522
    %v2031 = vpop.permute.xlu0 %2030
    %2034 = vset.pattern.permute.xlu0 0
    %2035 = vperm.xlu0 %2034, %v1524
    %v2036 = vpop.permute.xlu0 %2035
    %2039 = vset.pattern.permute.xlu0 0
    %2040 = vperm.xlu0 %2039, %v1526
    %v2041 = vpop.permute.xlu0 %2040
    %2044 = vset.pattern.permute.xlu0 0
    %2045 = vperm.xlu0 %2044, %v1528
    %v2046 = vpop.permute.xlu0 %2045
    %2049 = vset.pattern.permute.xlu0 0
    %2050 = vperm.xlu0 %2049, %v1530
    %v2051 = vpop.permute.xlu0 %2050
    %2054 = vset.pattern.permute.xlu0 0
    %2055 = vperm.xlu0 %2054, %v1532
    %v2056 = vpop.permute.xlu0 %2055
    %2059 = vset.pattern.permute.xlu0 0
    %2060 = vperm.xlu0 %2059, %v1534
    %v2061 = vpop.permute.xlu0 %2060
    %2064 = vset.pattern.permute.xlu0 0
    %2065 = vperm.xlu0 %2064, %v1536
    %v2066 = vpop.permute.xlu0 %2065
    %2069 = vset.pattern.permute.xlu0 0
    %2070 = vperm.xlu0 %2069, %v1538
    %v2071 = vpop.permute.xlu0 %2070
    %2074 = vset.pattern.permute.xlu0 0
    %2075 = vperm.xlu0 %2074, %v1540
    %v2076 = vpop.permute.xlu0 %2075
    %2079 = vset.pattern.permute.xlu0 0
    %2080 = vperm.xlu0 %2079, %v1542
    %v2081 = vpop.permute.xlu0 %2080
    %2084 = vset.pattern.permute.xlu0 0
    %2085 = vperm.xlu0 %2084, %v1544
    %v2086 = vpop.permute.xlu0 %2085
    %2089 = vset.pattern.permute.xlu0 0
    %2090 = vperm.xlu0 %2089, %v1546
    %v2091 = vpop.permute.xlu0 %2090
    %2094 = vset.pattern.permute.xlu0 0
    %2095 = vperm.xlu0 %2094, %v1548
    %v2096 = vpop.permute.xlu0 %2095
    %2099 = vset.pattern.permute.xlu0 0
    %2100 = vperm.xlu0 %2099, %v1550
    %v2101 = vpop.permute.xlu0 %2100
    %2104 = vset.pattern.permute.xlu0 0
    %2105 = vperm.xlu0 %2104, %v1552
    %v2106 = vpop.permute.xlu0 %2105
    %2109 = vset.pattern.permute.xlu0 0
    %2110 = vperm.xlu0 %2109, %v1554
    %v2111 = vpop.permute.xlu0 %2110
    %2114 = vset.pattern.permute.xlu0 0
    %2115 = vperm.xlu0 %2114, %v1556
    %v2116 = vpop.permute.xlu0 %2115
    %2119 = vset.pattern.permute.xlu0 0
    %2120 = vperm.xlu0 %2119, %v1558
    %v2121 = vpop.permute.xlu0 %2120
    %2124 = vset.pattern.permute.xlu0 0
    %2125 = vperm.xlu0 %2124, %v1560
    %v2126 = vpop.permute.xlu0 %2125
    %2129 = vset.pattern.permute.xlu0 0
    %2130 = vperm.xlu0 %2129, %v1562
    %v2131 = vpop.permute.xlu0 %2130
    %2134 = vset.pattern.permute.xlu0 0
    %2135 = vperm.xlu0 %2134, %v1564
    %v2136 = vpop.permute.xlu0 %2135
    %2139 = vset.pattern.permute.xlu0 0
    %2140 = vperm.xlu0 %2139, %v1566
    %v2141 = vpop.permute.xlu0 %2140
    %2144 = vset.pattern.permute.xlu0 0
    %2145 = vperm.xlu0 %2144, %v1568
    %v2146 = vpop.permute.xlu0 %2145
    %2149 = vset.pattern.permute.xlu0 0
    %2150 = vperm.xlu0 %2149, %v1570
    %v2151 = vpop.permute.xlu0 %2150
    %2154 = vset.pattern.permute.xlu0 0
    %2155 = vperm.xlu0 %2154, %v1572
    %v2156 = vpop.permute.xlu0 %2155
    %2159 = vset.pattern.permute.xlu0 0
    %2160 = vperm.xlu0 %2159, %v1574
    %v2161 = vpop.permute.xlu0 %2160
    %2164 = vset.pattern.permute.xlu0 0
    %2165 = vperm.xlu0 %2164, %v1576
    %v2166 = vpop.permute.xlu0 %2165
    %2169 = vset.pattern.permute.xlu0 0
    %2170 = vperm.xlu0 %2169, %v1578
    %v2171 = vpop.permute.xlu0 %2170
    %2174 = vset.pattern.permute.xlu0 0
    %2175 = vperm.xlu0 %2174, %v1580
    %v2176 = vpop.permute.xlu0 %2175
    %2179 = vset.pattern.permute.xlu0 0
    %2180 = vperm.xlu0 %2179, %v1582
    %v2181 = vpop.permute.xlu0 %2180
    %v2183 = vlaneseq
    %v2184 = vshrl.u32 %v2183, 7
    %v2185 = vsub.s32 0, %v2184
    %v2186 = vrot.slane %v1855, %v2185
    %v2187 = vlaneseq
    %v2188 = vshrl.u32 %v2187, 7
    %v2189 = vsub.s32 0, %v2188
    %v2190 = vrot.slane %v1862, %v2189
    %v2193 = vadd.f32 %v1866, %v2186
    %v2194 = vadd.f32 %v1871, %v2186
    %v2195 = vadd.f32 %v1876, %v2186
    %v2196 = vadd.f32 %v1881, %v2186
    %v2197 = vadd.f32 %v1886, %v2186
    %v2198 = vadd.f32 %v1891, %v2186
    %v2199 = vadd.f32 %v1896, %v2186
    %v2200 = vadd.f32 %v1901, %v2186
    %v2201 = vadd.f32 %v1906, %v2186
    %v2202 = vadd.f32 %v1911, %v2186
    %v2203 = vadd.f32 %v1916, %v2186
    %v2204 = vadd.f32 %v1921, %v2186
    %v2205 = vadd.f32 %v1926, %v2186
    %v2206 = vadd.f32 %v1931, %v2186
    %v2207 = vadd.f32 %v1936, %v2186
    %v2208 = vadd.f32 %v1941, %v2186
    %v2209 = vadd.f32 %v1946, %v2186
    %v2210 = vadd.f32 %v1951, %v2186
    %v2211 = vadd.f32 %v1956, %v2186
    %v2212 = vadd.f32 %v1961, %v2186
    %v2213 = vadd.f32 %v1966, %v2186
    %v2214 = vadd.f32 %v1971, %v2186
    %v2215 = vadd.f32 %v1976, %v2186
    %v2216 = vadd.f32 %v1981, %v2186
    %v2217 = vadd.f32 %v1986, %v2186
    %v2218 = vadd.f32 %v1991, %v2186
    %v2219 = vadd.f32 %v1996, %v2186
    %v2220 = vadd.f32 %v2001, %v2186
    %v2221 = vadd.f32 %v2006, %v2186
    %v2222 = vadd.f32 %v2011, %v2186
    %v2223 = vadd.f32 %v2016, %v2186
    %v2224 = vadd.f32 %v2021, %v2186
    %v2225 = vadd.f32 %v2026, %v2190
    %v2226 = vadd.f32 %v2031, %v2190
    %v2227 = vadd.f32 %v2036, %v2190
    %v2228 = vadd.f32 %v2041, %v2190
    %v2229 = vadd.f32 %v2046, %v2190
    %v2230 = vadd.f32 %v2051, %v2190
    %v2231 = vadd.f32 %v2056, %v2190
    %v2232 = vadd.f32 %v2061, %v2190
    %v2233 = vadd.f32 %v2066, %v2190
    %v2234 = vadd.f32 %v2071, %v2190
    %v2235 = vadd.f32 %v2076, %v2190
    %v2236 = vadd.f32 %v2081, %v2190
    %v2237 = vadd.f32 %v2086, %v2190
    %v2238 = vadd.f32 %v2091, %v2190
    %v2239 = vadd.f32 %v2096, %v2190
    %v2240 = vadd.f32 %v2101, %v2190
    %v2241 = vadd.f32 %v2106, %v2190
    %v2242 = vadd.f32 %v2111, %v2190
    %v2243 = vadd.f32 %v2116, %v2190
    %v2244 = vadd.f32 %v2121, %v2190
    %v2245 = vadd.f32 %v2126, %v2190
    %v2246 = vadd.f32 %v2131, %v2190
    %v2247 = vadd.f32 %v2136, %v2190
    %v2248 = vadd.f32 %v2141, %v2190
    %v2249 = vadd.f32 %v2146, %v2190
    %v2250 = vadd.f32 %v2151, %v2190
    %v2251 = vadd.f32 %v2156, %v2190
    %v2252 = vadd.f32 %v2161, %v2190
    %v2253 = vadd.f32 %v2166, %v2190
    %v2254 = vadd.f32 %v2171, %v2190
    %v2255 = vadd.f32 %v2176, %v2190
    %v2256 = vadd.f32 %v2181, %v2190
    %v2257 = vmul.f32 %v441, %v2193
    %v2258 = vmul.f32 %v446, %v2194
    %v2259 = vmul.f32 %v451, %v2195
    %v2260 = vmul.f32 %v456, %v2196
    %v2261 = vmul.f32 %v461, %v2197
    %v2262 = vmul.f32 %v466, %v2198
    %v2263 = vmul.f32 %v471, %v2199
    %v2264 = vmul.f32 %v476, %v2200
    %v2265 = vmul.f32 %v481, %v2201
    %v2266 = vmul.f32 %v486, %v2202
    %v2267 = vmul.f32 %v491, %v2203
    %v2268 = vmul.f32 %v496, %v2204
    %v2269 = vmul.f32 %v501, %v2205
    %v2270 = vmul.f32 %v506, %v2206
    %v2271 = vmul.f32 %v511, %v2207
    %v2272 = vmul.f32 %v516, %v2208
    %v2273 = vmul.f32 %v521, %v2209
    %v2274 = vmul.f32 %v526, %v2210
    %v2275 = vmul.f32 %v531, %v2211
    %v2276 = vmul.f32 %v536, %v2212
    %v2277 = vmul.f32 %v541, %v2213
    %v2278 = vmul.f32 %v546, %v2214
    %v2279 = vmul.f32 %v551, %v2215
    %v2280 = vmul.f32 %v556, %v2216
    %v2281 = vmul.f32 %v561, %v2217
    %v2282 = vmul.f32 %v566, %v2218
    %v2283 = vmul.f32 %v571, %v2219
    %v2284 = vmul.f32 %v576, %v2220
    %v2285 = vmul.f32 %v581, %v2221
    %v2286 = vmul.f32 %v586, %v2222
    %v2287 = vmul.f32 %v591, %v2223
    %v2288 = vmul.f32 %v596, %v2224
    %v2289 = vmul.f32 %v601, %v2225
    %v2290 = vmul.f32 %v606, %v2226
    %v2291 = vmul.f32 %v611, %v2227
    %v2292 = vmul.f32 %v616, %v2228
    %v2293 = vmul.f32 %v621, %v2229
    %v2294 = vmul.f32 %v626, %v2230
    %v2295 = vmul.f32 %v631, %v2231
    %v2296 = vmul.f32 %v636, %v2232
    %v2297 = vmul.f32 %v641, %v2233
    %v2298 = vmul.f32 %v646, %v2234
    %v2299 = vmul.f32 %v651, %v2235
    %v2300 = vmul.f32 %v656, %v2236
    %v2301 = vmul.f32 %v661, %v2237
    %v2302 = vmul.f32 %v666, %v2238
    %v2303 = vmul.f32 %v671, %v2239
    %v2304 = vmul.f32 %v676, %v2240
    %v2305 = vmul.f32 %v681, %v2241
    %v2306 = vmul.f32 %v686, %v2242
    %v2307 = vmul.f32 %v691, %v2243
    %v2308 = vmul.f32 %v696, %v2244
    %v2309 = vmul.f32 %v701, %v2245
    %v2310 = vmul.f32 %v706, %v2246
    %v2311 = vmul.f32 %v711, %v2247
    %v2312 = vmul.f32 %v716, %v2248
    %v2313 = vmul.f32 %v721, %v2249
    %v2314 = vmul.f32 %v726, %v2250
    %v2315 = vmul.f32 %v731, %v2251
    %v2316 = vmul.f32 %v736, %v2252
    %v2317 = vmul.f32 %v741, %v2253
    %v2318 = vmul.f32 %v746, %v2254
    %v2319 = vmul.f32 %v751, %v2255
    %v2320 = vmul.f32 %v756, %v2256
    %2321 = vst [vmem:[#allocation2] sm:$0xff] %v2257
    %2322 = vst [vmem:[#allocation2 + $0x8] sm:$0xff] %v2258
    %2323 = vst [vmem:[#allocation2 + $0x10] sm:$0xff] %v2259
    %2324 = vst [vmem:[#allocation2 + $0x18] sm:$0xff] %v2260
    %2325 = vst [vmem:[#allocation2 + $0x20] sm:$0xff] %v2261
    %2326 = vst [vmem:[#allocation2 + $0x28] sm:$0xff] %v2262
    %2327 = vst [vmem:[#allocation2 + $0x30] sm:$0xff] %v2263
    %2328 = vst [vmem:[#allocation2 + $0x38] sm:$0xff] %v2264
    %2329 = vst [vmem:[#allocation2 + $0x40] sm:$0xff] %v2265
    %2330 = vst [vmem:[#allocation2 + $0x48] sm:$0xff] %v2266
    %2331 = vst [vmem:[#allocation2 + $0x50] sm:$0xff] %v2267
    %2332 = vst [vmem:[#allocation2 + $0x58] sm:$0xff] %v2268
    %2333 = vst [vmem:[#allocation2 + $0x60] sm:$0xff] %v2269
    %2334 = vst [vmem:[#allocation2 + $0x68] sm:$0xff] %v2270
    %2335 = vst [vmem:[#allocation2 + $0x70] sm:$0xff] %v2271
    %2336 = vst [vmem:[#allocation2 + $0x78] sm:$0xff] %v2272
    %2337 = vst [vmem:[#allocation2 + $0x80] sm:$0xff] %v2273
    %2338 = vst [vmem:[#allocation2 + $0x88] sm:$0xff] %v2274
    %2339 = vst [vmem:[#allocation2 + $0x90] sm:$0xff] %v2275
    %2340 = vst [vmem:[#allocation2 + $0x98] sm:$0xff] %v2276
    %2341 = vst [vmem:[#allocation2 + $0xa0] sm:$0xff] %v2277
    %2342 = vst [vmem:[#allocation2 + $0xa8] sm:$0xff] %v2278
    %2343 = vst [vmem:[#allocation2 + $0xb0] sm:$0xff] %v2279
    %2344 = vst [vmem:[#allocation2 + $0xb8] sm:$0xff] %v2280
    %2345 = vst [vmem:[#allocation2 + $0xc0] sm:$0xff] %v2281
    %2346 = vst [vmem:[#allocation2 + $0xc8] sm:$0xff] %v2282
    %2347 = vst [vmem:[#allocation2 + $0xd0] sm:$0xff] %v2283
    %2348 = vst [vmem:[#allocation2 + $0xd8] sm:$0xff] %v2284
    %2349 = vst [vmem:[#allocation2 + $0xe0] sm:$0xff] %v2285
    %2350 = vst [vmem:[#allocation2 + $0xe8] sm:$0xff] %v2286
    %2351 = vst [vmem:[#allocation2 + $0xf0] sm:$0xff] %v2287
    %2352 = vst [vmem:[#allocation2 + $0xf8] sm:$0xff] %v2288
    %2353 = vst [vmem:[#allocation2 + $0x100] sm:$0xff] %v2289
    %2354 = vst [vmem:[#allocation2 + $0x108] sm:$0xff] %v2290
    %2355 = vst [vmem:[#allocation2 + $0x110] sm:$0xff] %v2291
    %2356 = vst [vmem:[#allocation2 + $0x118] sm:$0xff] %v2292
    %2357 = vst [vmem:[#allocation2 + $0x120] sm:$0xff] %v2293
    %2358 = vst [vmem:[#allocation2 + $0x128] sm:$0xff] %v2294
    %2359 = vst [vmem:[#allocation2 + $0x130] sm:$0xff] %v2295
    %2360 = vst [vmem:[#allocation2 + $0x138] sm:$0xff] %v2296
    %2361 = vst [vmem:[#allocation2 + $0x140] sm:$0xff] %v2297
    %2362 = vst [vmem:[#allocation2 + $0x148] sm:$0xff] %v2298
    %2363 = vst [vmem:[#allocation2 + $0x150] sm:$0xff] %v2299
    %2364 = vst [vmem:[#allocation2 + $0x158] sm:$0xff] %v2300
    %2365 = vst [vmem:[#allocation2 + $0x160] sm:$0xff] %v2301
    %2366 = vst [vmem:[#allocation2 + $0x168] sm:$0xff] %v2302
    %2367 = vst [vmem:[#allocation2 + $0x170] sm:$0xff] %v2303
    %2368 = vst [vmem:[#allocation2 + $0x178] sm:$0xff] %v2304
    %2369 = vst [vmem:[#allocation2 + $0x180] sm:$0xff] %v2305
    %2370 = vst [vmem:[#allocation2 + $0x188] sm:$0xff] %v2306
    %2371 = vst [vmem:[#allocation2 + $0x190] sm:$0xff] %v2307
    %2372 = vst [vmem:[#allocation2 + $0x198] sm:$0xff] %v2308
    %2373 = vst [vmem:[#allocation2 + $0x1a0] sm:$0xff] %v2309
    %2374 = vst [vmem:[#allocation2 + $0x1a8] sm:$0xff] %v2310
    %2375 = vst [vmem:[#allocation2 + $0x1b0] sm:$0xff] %v2311
    %2376 = vst [vmem:[#allocation2 + $0x1b8] sm:$0xff] %v2312
    %2377 = vst [vmem:[#allocation2 + $0x1c0] sm:$0xff] %v2313
    %2378 = vst [vmem:[#allocation2 + $0x1c8] sm:$0xff] %v2314
    %2379 = vst [vmem:[#allocation2 + $0x1d0] sm:$0xff] %v2315
    %2380 = vst [vmem:[#allocation2 + $0x1d8] sm:$0xff] %v2316
    %2381 = vst [vmem:[#allocation2 + $0x1e0] sm:$0xff] %v2317
    %2382 = vst [vmem:[#allocation2 + $0x1e8] sm:$0xff] %v2318
    %2383 = vst [vmem:[#allocation2 + $0x1f0] sm:$0xff] %v2319
    %2384 = vst [vmem:[#allocation2 + $0x1f8] sm:$0xff] %v2320
    // Predicated region
    $region46: #{decoderv2_forward.1} parent=1 // pred_check
      _
    $region47: #{decoderv2_forward.1} parent=1 // pred_check_branch
      %2386 = sbr.rel (0) target = $region49
    $region48: #{decoderv2_forward.1} parent=1 // pred_region
      %s2388 = ssub.s32 8192, 8192
      %2389 = vsyncadd [#allocation3], %s2388
      %s2390 = sshll.u32 [#allocation2], 4
      %s2391 = int_to_ptr.vmem [resolvable:$true] %s2390
      %2396 = dma.vmem_to_hbm [thread:$0]  %s2391, 8192, %s11, [#allocation3], 128, 128, 8
    $region49: #{decoderv2_forward.1} parent=1 // pred_fallthru
      _
    // Predicated region
    $region50: #{decoderv2_forward.1} parent=1 // pred_check
      _
    $region51: #{decoderv2_forward.1} parent=1 // pred_check_branch
      %2398 = sbr.rel (0) target = $region53
    $region52: #{decoderv2_forward.1} parent=1 // pred_region
      %2399 = dma.done [#allocation3], 8192
    $region53: #{decoderv2_forward.1} parent=1 // pred_fallthru
      _
    %2400 = vsyncpa [#allocation3], 1

</llo_original>
